<compile_context>
chip_gen: v7x
topology: tpu7x:2x2x1
jax: 0.10.0
libtpu: 0.0.40
codegen_flags: <defaults>
</compile_context>

<pallas_src>
import numpy as np
import jax
import jax.numpy as jnp
from jax.experimental import pallas as pl
from jax.experimental.pallas import tpu as pltpu

# ----------------------------- model constants ------------------------------
B, T = 2, 8
D_OBJ = 32            # const.object_feature_dim
HIDDEN = 32           # const.context_layer.hidden_size
NUM_HEADS = 4
HEAD_DIM = HIDDEN // NUM_HEADS
FF_DIM = 64
QKV_PACKED = 128      # lane-dense packed QKV width (3*HIDDEN = 96, zero-padded)
BN_EPS = 1e-5
LN_EPS = 1e-12


# ----------------------------- in-kernel helpers ------------------------------
def _layer_norm(x, g, b):
    mu = jnp.mean(x, axis=-1, keepdims=True)
    var = jnp.mean((x - mu) ** 2, axis=-1, keepdims=True)
    return (x - mu) * jax.lax.rsqrt(var + LN_EPS) * g + b


def _split_heads(z):
    """(B*T, HIDDEN) -> (B*NUM_HEADS, T, HEAD_DIM); row index = b*NUM_HEADS + h."""
    parts = []
    for b in range(B):
        zb = z[b * T:(b + 1) * T, :]                      # (T, HIDDEN)
        for h in range(NUM_HEADS):
            parts.append(zb[:, h * HEAD_DIM:(h + 1) * HEAD_DIM])   # (T, HEAD_DIM)
    return jnp.stack(parts, axis=0)


def _merge_heads(z):
    """(B*NUM_HEADS, T, C) -> (B*T, NUM_HEADS*C); column index = h*C + c."""
    rows = []
    for b in range(B):
        rows.append(jnp.concatenate(
            [z[b * NUM_HEADS + h] for h in range(NUM_HEADS)], axis=-1))  # (T, NUM_HEADS*C)
    return jnp.concatenate(rows, axis=0)


# ------------------------------ fused Pallas kernel ---------------------------
def _object_encoder_kernel(feat_ref, om_ref, pm_ref, maskf_ref, padf_ref,
                           w_in_ref, b_in_ref, bng_ref, bnb_ref,
                           wqkv_ref, bqkv_ref, wo_ref, bo_ref,
                           ln1g_ref, ln1b_ref, w1_ref, b1_ref,
                           w2_ref, b2_ref, ln2g_ref, ln2b_ref,
                           out_ref, attn_ref):
    # ---- preprocess_object_features: mask / pad blends ----
    x = feat_ref[...]                                     # (N, D)
    om = om_ref[...]                                      # (N, 1)
    pm = pm_ref[...]                                      # (N, 1)
    x = om * maskf_ref[...] + (1.0 - om) * x
    x = pm * padf_ref[...] + (1.0 - pm) * x

    # ---- input_layer: Linear + BatchNorm1d (training batch stats) + ReLU ----
    y = jnp.dot(x, w_in_ref[...], preferred_element_type=jnp.float32) + b_in_ref[...]
    mu = jnp.mean(y, axis=0, keepdims=True)
    var = jnp.mean((y - mu) ** 2, axis=0, keepdims=True)
    y = (y - mu) * jax.lax.rsqrt(var + BN_EPS)
    y = jnp.maximum(y * bng_ref[...] + bnb_ref[...], 0.0)            # (N, HIDDEN)

    # ---- context layer: fused lane-dense QKV projection (one matmul) ----
    qkv = jnp.dot(y, wqkv_ref[...], preferred_element_type=jnp.float32) + bqkv_ref[...]
    qh = _split_heads(qkv[:, 0:HIDDEN])                   # (B*NH, T, HD)
    kh = _split_heads(qkv[:, HIDDEN:2 * HIDDEN])
    vh = _split_heads(qkv[:, 2 * HIDDEN:3 * HIDDEN])

    # ---- batched attention over (batch, head) ----
    scale = 1.0 / float(np.sqrt(HEAD_DIM))
    s = jnp.einsum('bqd,bkd->bqk', qh, kh,
                   preferred_element_type=jnp.float32) * scale       # (B*NH, T, T)
    s = s - jnp.max(s, axis=-1, keepdims=True)
    e = jnp.exp(s)
    p = e / jnp.sum(e, axis=-1, keepdims=True)                        # (B*NH, T, T)

    # single lane-packed store of attention probabilities: (N, NUM_HEADS*T)
    attn_ref[...] = _merge_heads(p)

    ctx = jnp.einsum('bqk,bkd->bqd', p, vh,
                     preferred_element_type=jnp.float32)              # (B*NH, T, HD)
    ctx = _merge_heads(ctx)                                           # (N, HIDDEN)

    ao = jnp.dot(ctx, wo_ref[...], preferred_element_type=jnp.float32) + bo_ref[...]
    h1 = _layer_norm(y + ao, ln1g_ref[...], ln1b_ref[...])
    ff = jnp.dot(h1, w1_ref[...], preferred_element_type=jnp.float32) + b1_ref[...]
    ff = jax.nn.gelu(ff, approximate=True)
    ff = jnp.dot(ff, w2_ref[...], preferred_element_type=jnp.float32) + b2_ref[...]
    out_ref[...] = _layer_norm(h1 + ff, ln2g_ref[...], ln2b_ref[...])


# ---------------------------------- wrapper ------------------------------------
def _pack_qkv(params):
    pad = QKV_PACKED - 3 * HIDDEN
    w = jnp.concatenate([params['wq'], params['wk'], params['wv'],
                         jnp.zeros((HIDDEN, pad), jnp.float32)], axis=1)   # (HIDDEN, 128)
    b = jnp.concatenate([params['bq'], params['bk'], params['bv'],
                         jnp.zeros((1, pad), jnp.float32)], axis=1)        # (1, 128)
    return w, b


@jax.jit
def object_encoder_forward(params, object_features, object_mask, pad_mask):
    Bx, Tx, Dx = object_features.shape
    feat = object_features.reshape(Bx * Tx, Dx)
    om = object_mask.reshape(Bx * Tx, 1).astype(jnp.float32)
    pm = pad_mask.reshape(Bx * Tx, 1).astype(jnp.float32)
    w_qkv, b_qkv = _pack_qkv(params)

    vspec = pl.BlockSpec(memory_space=pltpu.MemorySpace.VMEM)
    out_flat, attn_packed = pl.pallas_call(
        _object_encoder_kernel,
        out_shape=(jax.ShapeDtypeStruct((Bx * Tx, HIDDEN), jnp.float32),
                   jax.ShapeDtypeStruct((Bx * Tx, NUM_HEADS * Tx), jnp.float32)),
        in_specs=[vspec] * 21,
        out_specs=(vspec, vspec),
    )(feat, om, pm, params['mask_feat'], params['pad_feat'],
      params['w_in'], params['b_in'], params['bn_gamma'], params['bn_beta'],
      w_qkv, b_qkv, params['wo'], params['bo'],
      params['ln1_g'], params['ln1_b'], params['w1'], params['b1'],
      params['w2'], params['b2'], params['ln2_g'], params['ln2_b'])

    out = out_flat.reshape(Bx, Tx, HIDDEN)
    # free layout plumbing in XLA: lane-packed (B*T, H*T) -> (B, H, T, T)
    attn = attn_packed.reshape(Bx, Tx, NUM_HEADS, Tx).transpose(0, 2, 1, 3)
    return out, attn


# -------------------------- deterministic parameters -------------------------
def init_params(key):
    ks = jax.random.split(key, 24)
    u = lambda k, s: jax.random.uniform(k, s, jnp.float32, -0.1, 0.1)
    n = lambda k, s, sc=0.05: sc * jax.random.normal(k, s, jnp.float32)
    return {
        'mask_feat': u(ks[0], (1, D_OBJ)),
        'pad_feat':  u(ks[1], (1, D_OBJ)),
        'w_in': n(ks[2], (D_OBJ, HIDDEN)), 'b_in': u(ks[3], (1, HIDDEN)),
        'bn_gamma': 1.0 + n(ks[4], (1, HIDDEN), 0.1),
        'bn_beta': n(ks[5], (1, HIDDEN), 0.1),
        'wq': n(ks[6], (HIDDEN, HIDDEN)), 'bq': u(ks[7], (1, HIDDEN)),
        'wk': n(ks[8], (HIDDEN, HIDDEN)), 'bk': u(ks[9], (1, HIDDEN)),
        'wv': n(ks[10], (HIDDEN, HIDDEN)), 'bv': u(ks[11], (1, HIDDEN)),
        'wo': n(ks[12], (HIDDEN, HIDDEN)), 'bo': u(ks[13], (1, HIDDEN)),
        'ln1_g': 1.0 + n(ks[14], (1, HIDDEN), 0.1), 'ln1_b': n(ks[15], (1, HIDDEN), 0.1),
        'w1': n(ks[16], (HIDDEN, FF_DIM)), 'b1': u(ks[17], (1, FF_DIM)),
        'w2': n(ks[18], (FF_DIM, HIDDEN)), 'b2': u(ks[19], (1, HIDDEN)),
        'ln2_g': 1.0 + n(ks[20], (1, HIDDEN), 0.1), 'ln2_b': n(ks[21], (1, HIDDEN), 0.1),
    }


# ---------------------------- pure-JAX reference ------------------------------
def reference_forward(params, object_features, object_mask, pad_mask):
    om = object_mask[..., None].astype(jnp.float32)
    pm = pad_mask[..., None].astype(jnp.float32)
    x = om * params['mask_feat'][0] + (1.0 - om) * object_features
    x = pm * params['pad_feat'][0] + (1.0 - pm) * x
    Bx, Tx, Dx = x.shape
    y = x.reshape(-1, Dx) @ params['w_in'] + params['b_in'][0]
    mu = y.mean(0)
    var = ((y - mu) ** 2).mean(0)
    y = (y - mu) / jnp.sqrt(var + BN_EPS) * params['bn_gamma'][0] + params['bn_beta'][0]
    y = jnp.maximum(y, 0.0).reshape(Bx, Tx, HIDDEN)

    def ln(z, g, b):
        m = z.mean(-1, keepdims=True)
        v = ((z - m) ** 2).mean(-1, keepdims=True)
        return (z - m) / jnp.sqrt(v + LN_EPS) * g + b

    q = y @ params['wq'] + params['bq'][0]
    k = y @ params['wk'] + params['bk'][0]
    v = y @ params['wv'] + params['bv'][0]
    qh = q.reshape(Bx, Tx, NUM_HEADS, HEAD_DIM).transpose(0, 2, 1, 3)
    kh = k.reshape(Bx, Tx, NUM_HEADS, HEAD_DIM).transpose(0, 2, 1, 3)
    vh = v.reshape(Bx, Tx, NUM_HEADS, HEAD_DIM).transpose(0, 2, 1, 3)
    s = jnp.einsum('bhqd,bhkd->bhqk', qh, kh) / np.sqrt(HEAD_DIM)
    p = jax.nn.softmax(s, axis=-1)
    ctx = jnp.einsum('bhqk,bhkd->bhqd', p, vh).transpose(0, 2, 1, 3).reshape(Bx, Tx, HIDDEN)
    ao = ctx @ params['wo'] + params['bo'][0]
    h1 = ln(y + ao, params['ln1_g'][0], params['ln1_b'][0])
    ff = jax.nn.gelu(h1 @ params['w1'] + params['b1'][0], approximate=True)
    ff = ff @ params['w2'] + params['b2'][0]
    out = ln(h1 + ff, params['ln2_g'][0], params['ln2_b'][0])
    return out, p


# ----------------------------------- main -------------------------------------
if __name__ == "__main__":
    key = jax.random.PRNGKey(0)
    kp, kx, km = jax.random.split(key, 3)
    params = init_params(kp)

    object_features = jax.random.normal(kx, (B, T, D_OBJ), jnp.float32)
    object_mask = jax.random.bernoulli(km, 0.25, (B, T)).astype(jnp.float32)
    pad_mask = jnp.broadcast_to((jnp.arange(T) >= T - 2).astype(jnp.float32), (B, T))

    out, attn = object_encoder_forward(params, object_features, object_mask, pad_mask)
    out = jax.block_until_ready(out)
    attn = jax.block_until_ready(attn)

    ref_out, ref_attn = reference_forward(params, object_features, object_mask, pad_mask)
    np.testing.assert_allclose(np.asarray(out), np.asarray(ref_out), rtol=2e-3, atol=2e-3)
    np.testing.assert_allclose(np.asarray(attn), np.asarray(ref_attn), rtol=2e-3, atol=2e-3)

    print("KERNEL_OK")
</pallas_src>

<mosaic_0001>
module attributes {stable_mosaic.version = 11 : i64} {
  func.func @_object_encoder_kernel(%arg0: memref<16x32xf32, #tpu.memory_space<vmem>>, %arg1: memref<16x1xf32, #tpu.memory_space<vmem>>, %arg2: memref<16x1xf32, #tpu.memory_space<vmem>>, %arg3: memref<1x32xf32, #tpu.memory_space<vmem>>, %arg4: memref<1x32xf32, #tpu.memory_space<vmem>>, %arg5: memref<32x32xf32, #tpu.memory_space<vmem>>, %arg6: memref<1x32xf32, #tpu.memory_space<vmem>>, %arg7: memref<1x32xf32, #tpu.memory_space<vmem>>, %arg8: memref<1x32xf32, #tpu.memory_space<vmem>>, %arg9: memref<32x128xf32, #tpu.memory_space<vmem>>, %arg10: memref<1x128xf32, #tpu.memory_space<vmem>>, %arg11: memref<32x32xf32, #tpu.memory_space<vmem>>, %arg12: memref<1x32xf32, #tpu.memory_space<vmem>>, %arg13: memref<1x32xf32, #tpu.memory_space<vmem>>, %arg14: memref<1x32xf32, #tpu.memory_space<vmem>>, %arg15: memref<32x64xf32, #tpu.memory_space<vmem>>, %arg16: memref<1x64xf32, #tpu.memory_space<vmem>>, %arg17: memref<64x32xf32, #tpu.memory_space<vmem>>, %arg18: memref<1x32xf32, #tpu.memory_space<vmem>>, %arg19: memref<1x32xf32, #tpu.memory_space<vmem>>, %arg20: memref<1x32xf32, #tpu.memory_space<vmem>>, %arg21: memref<16x32xf32, #tpu.memory_space<vmem>>, %arg22: memref<16x32xf32, #tpu.memory_space<vmem>>) attributes {dimension_semantics = [], scalar_prefetch = 0 : i64, scratch_operands = 0 : i64, tpu.core_type = #tpu.core_type<tc>} {
    %c0 = arith.constant 0 : index
    %c0_0 = arith.constant 0 : index
    %0 = vector.load %arg0[%c0, %c0_0] : memref<16x32xf32, #tpu.memory_space<vmem>>, vector<16x32xf32>
    %c0_1 = arith.constant 0 : index
    %c0_2 = arith.constant 0 : index
    %1 = vector.load %arg1[%c0_1, %c0_2] : memref<16x1xf32, #tpu.memory_space<vmem>>, vector<16x1xf32>
    %c0_3 = arith.constant 0 : index
    %c0_4 = arith.constant 0 : index
    %2 = vector.load %arg2[%c0_3, %c0_4] : memref<16x1xf32, #tpu.memory_space<vmem>>, vector<16x1xf32>
    %c0_5 = arith.constant 0 : index
    %c0_6 = arith.constant 0 : index
    %3 = vector.load %arg3[%c0_5, %c0_6] : memref<1x32xf32, #tpu.memory_space<vmem>>, vector<1x32xf32>
    %4 = vector.broadcast %1 : vector<16x1xf32> to vector<16x32xf32>
    %5 = vector.broadcast %3 : vector<1x32xf32> to vector<16x32xf32>
    %6 = arith.mulf %4, %5 : vector<16x32xf32>
    %cst = arith.constant 1.000000e+00 : f32
    %7 = vector.broadcast %cst : f32 to vector<16x1xf32>
    %8 = arith.subf %7, %1 : vector<16x1xf32>
    %9 = vector.broadcast %8 : vector<16x1xf32> to vector<16x32xf32>
    %10 = arith.mulf %9, %0 : vector<16x32xf32>
    %11 = arith.addf %6, %10 : vector<16x32xf32>
    %c0_7 = arith.constant 0 : index
    %c0_8 = arith.constant 0 : index
    %12 = vector.load %arg4[%c0_7, %c0_8] : memref<1x32xf32, #tpu.memory_space<vmem>>, vector<1x32xf32>
    %13 = vector.broadcast %2 : vector<16x1xf32> to vector<16x32xf32>
    %14 = vector.broadcast %12 : vector<1x32xf32> to vector<16x32xf32>
    %15 = arith.mulf %13, %14 : vector<16x32xf32>
    %cst_9 = arith.constant 1.000000e+00 : f32
    %16 = vector.broadcast %cst_9 : f32 to vector<16x1xf32>
    %17 = arith.subf %16, %2 : vector<16x1xf32>
    %18 = vector.broadcast %17 : vector<16x1xf32> to vector<16x32xf32>
    %19 = arith.mulf %18, %11 : vector<16x32xf32>
    %20 = arith.addf %15, %19 : vector<16x32xf32>
    %c0_10 = arith.constant 0 : index
    %c0_11 = arith.constant 0 : index
    %21 = vector.load %arg5[%c0_10, %c0_11] : memref<32x32xf32, #tpu.memory_space<vmem>>, vector<32x32xf32>
    %cst_12 = arith.constant dense<0.000000e+00> : vector<16x32xf32>
    %22 = tpu.matmul %20, %21, %cst_12 {dimension_numbers = #tpu.dot_dimension_numbers<[1], [0], [0], [1], [0, 0, 1, 1], [], []>} : vector<16x32xf32>, vector<32x32xf32>, vector<16x32xf32> -> vector<16x32xf32>
    %c0_13 = arith.constant 0 : index
    %c0_14 = arith.constant 0 : index
    %23 = vector.load %arg6[%c0_13, %c0_14] : memref<1x32xf32, #tpu.memory_space<vmem>>, vector<1x32xf32>
    %24 = vector.broadcast %23 : vector<1x32xf32> to vector<16x32xf32>
    %25 = arith.addf %22, %24 : vector<16x32xf32>
    %cst_15 = arith.constant dense<0.000000e+00> : vector<32xf32>
    %26 = vector.multi_reduction <add>, %25, %cst_15 [0] : vector<16x32xf32> to vector<32xf32>
    %27 = vector.shape_cast %26 : vector<32xf32> to vector<1x32xf32>
    %cst_16 = arith.constant 1.600000e+01 : f32
    %28 = vector.broadcast %cst_16 : f32 to vector<1x32xf32>
    %29 = arith.divf %27, %28 : vector<1x32xf32>
    %30 = vector.broadcast %29 : vector<1x32xf32> to vector<16x32xf32>
    %31 = arith.subf %25, %30 : vector<16x32xf32>
    %32 = arith.mulf %31, %31 : vector<16x32xf32>
    %cst_17 = arith.constant dense<0.000000e+00> : vector<32xf32>
    %33 = vector.multi_reduction <add>, %32, %cst_17 [0] : vector<16x32xf32> to vector<32xf32>
    %34 = vector.shape_cast %33 : vector<32xf32> to vector<1x32xf32>
    %cst_18 = arith.constant 1.600000e+01 : f32
    %35 = vector.broadcast %cst_18 : f32 to vector<1x32xf32>
    %36 = arith.divf %34, %35 : vector<1x32xf32>
    %37 = vector.broadcast %29 : vector<1x32xf32> to vector<16x32xf32>
    %38 = arith.subf %25, %37 : vector<16x32xf32>
    %cst_19 = arith.constant 9.99999974E-6 : f32
    %39 = vector.broadcast %cst_19 : f32 to vector<1x32xf32>
    %40 = arith.addf %36, %39 : vector<1x32xf32>
    %41 = math.rsqrt %40 : vector<1x32xf32>
    %42 = vector.broadcast %41 : vector<1x32xf32> to vector<16x32xf32>
    %43 = arith.mulf %38, %42 : vector<16x32xf32>
    %c0_20 = arith.constant 0 : index
    %c0_21 = arith.constant 0 : index
    %44 = vector.load %arg7[%c0_20, %c0_21] : memref<1x32xf32, #tpu.memory_space<vmem>>, vector<1x32xf32>
    %45 = vector.broadcast %44 : vector<1x32xf32> to vector<16x32xf32>
    %46 = arith.mulf %43, %45 : vector<16x32xf32>
    %c0_22 = arith.constant 0 : index
    %c0_23 = arith.constant 0 : index
    %47 = vector.load %arg8[%c0_22, %c0_23] : memref<1x32xf32, #tpu.memory_space<vmem>>, vector<1x32xf32>
    %48 = vector.broadcast %47 : vector<1x32xf32> to vector<16x32xf32>
    %49 = arith.addf %46, %48 : vector<16x32xf32>
    %cst_24 = arith.constant 0.000000e+00 : f32
    %50 = vector.broadcast %cst_24 : f32 to vector<16x32xf32>
    %51 = arith.maximumf %49, %50 : vector<16x32xf32>
    %c0_25 = arith.constant 0 : index
    %c0_26 = arith.constant 0 : index
    %52 = vector.load %arg9[%c0_25, %c0_26] : memref<32x128xf32, #tpu.memory_space<vmem>>, vector<32x128xf32>
    %cst_27 = arith.constant dense<0.000000e+00> : vector<16x128xf32>
    %53 = tpu.matmul %51, %52, %cst_27 {dimension_numbers = #tpu.dot_dimension_numbers<[1], [0], [0], [1], [0, 0, 1, 1], [], []>} : vector<16x32xf32>, vector<32x128xf32>, vector<16x128xf32> -> vector<16x128xf32>
    %c0_28 = arith.constant 0 : index
    %c0_29 = arith.constant 0 : index
    %54 = vector.load %arg10[%c0_28, %c0_29] : memref<1x128xf32, #tpu.memory_space<vmem>>, vector<1x128xf32>
    %55 = vector.broadcast %54 : vector<1x128xf32> to vector<16x128xf32>
    %56 = arith.addf %53, %55 : vector<16x128xf32>
    %57 = vector.extract_strided_slice %56 {offsets = [0, 0], sizes = [16, 32], strides = [1, 1]} : vector<16x128xf32> to vector<16x32xf32>
    %58 = vector.extract_strided_slice %57 {offsets = [0, 0], sizes = [8, 32], strides = [1, 1]} : vector<16x32xf32> to vector<8x32xf32>
    %59 = vector.extract_strided_slice %58 {offsets = [0, 0], sizes = [8, 8], strides = [1, 1]} : vector<8x32xf32> to vector<8x8xf32>
    %60 = vector.extract_strided_slice %58 {offsets = [0, 8], sizes = [8, 8], strides = [1, 1]} : vector<8x32xf32> to vector<8x8xf32>
    %61 = vector.extract_strided_slice %58 {offsets = [0, 16], sizes = [8, 8], strides = [1, 1]} : vector<8x32xf32> to vector<8x8xf32>
    %62 = vector.extract_strided_slice %58 {offsets = [0, 24], sizes = [8, 8], strides = [1, 1]} : vector<8x32xf32> to vector<8x8xf32>
    %63 = vector.extract_strided_slice %57 {offsets = [8, 0], sizes = [8, 32], strides = [1, 1]} : vector<16x32xf32> to vector<8x32xf32>
    %64 = vector.extract_strided_slice %63 {offsets = [0, 0], sizes = [8, 8], strides = [1, 1]} : vector<8x32xf32> to vector<8x8xf32>
    %65 = vector.extract_strided_slice %63 {offsets = [0, 8], sizes = [8, 8], strides = [1, 1]} : vector<8x32xf32> to vector<8x8xf32>
    %66 = vector.extract_strided_slice %63 {offsets = [0, 16], sizes = [8, 8], strides = [1, 1]} : vector<8x32xf32> to vector<8x8xf32>
    %67 = vector.extract_strided_slice %63 {offsets = [0, 24], sizes = [8, 8], strides = [1, 1]} : vector<8x32xf32> to vector<8x8xf32>
    %68 = vector.shape_cast %59 : vector<8x8xf32> to vector<1x8x8xf32>
    %69 = vector.shape_cast %60 : vector<8x8xf32> to vector<1x8x8xf32>
    %70 = vector.shape_cast %61 : vector<8x8xf32> to vector<1x8x8xf32>
    %71 = vector.shape_cast %62 : vector<8x8xf32> to vector<1x8x8xf32>
    %72 = vector.shape_cast %64 : vector<8x8xf32> to vector<1x8x8xf32>
    %73 = vector.shape_cast %65 : vector<8x8xf32> to vector<1x8x8xf32>
    %74 = vector.shape_cast %66 : vector<8x8xf32> to vector<1x8x8xf32>
    %75 = vector.shape_cast %67 : vector<8x8xf32> to vector<1x8x8xf32>
    %76 = tpu.concatenate %68, %69, %70, %71, %72, %73, %74, %75 in 0 : vector<1x8x8xf32>, vector<1x8x8xf32>, vector<1x8x8xf32>, vector<1x8x8xf32>, vector<1x8x8xf32>, vector<1x8x8xf32>, vector<1x8x8xf32>, vector<1x8x8xf32> -> vector<8x8x8xf32>
    %77 = vector.extract_strided_slice %56 {offsets = [0, 32], sizes = [16, 32], strides = [1, 1]} : vector<16x128xf32> to vector<16x32xf32>
    %78 = vector.extract_strided_slice %77 {offsets = [0, 0], sizes = [8, 32], strides = [1, 1]} : vector<16x32xf32> to vector<8x32xf32>
    %79 = vector.extract_strided_slice %78 {offsets = [0, 0], sizes = [8, 8], strides = [1, 1]} : vector<8x32xf32> to vector<8x8xf32>
    %80 = vector.extract_strided_slice %78 {offsets = [0, 8], sizes = [8, 8], strides = [1, 1]} : vector<8x32xf32> to vector<8x8xf32>
    %81 = vector.extract_strided_slice %78 {offsets = [0, 16], sizes = [8, 8], strides = [1, 1]} : vector<8x32xf32> to vector<8x8xf32>
    %82 = vector.extract_strided_slice %78 {offsets = [0, 24], sizes = [8, 8], strides = [1, 1]} : vector<8x32xf32> to vector<8x8xf32>
    %83 = vector.extract_strided_slice %77 {offsets = [8, 0], sizes = [8, 32], strides = [1, 1]} : vector<16x32xf32> to vector<8x32xf32>
    %84 = vector.extract_strided_slice %83 {offsets = [0, 0], sizes = [8, 8], strides = [1, 1]} : vector<8x32xf32> to vector<8x8xf32>
    %85 = vector.extract_strided_slice %83 {offsets = [0, 8], sizes = [8, 8], strides = [1, 1]} : vector<8x32xf32> to vector<8x8xf32>
    %86 = vector.extract_strided_slice %83 {offsets = [0, 16], sizes = [8, 8], strides = [1, 1]} : vector<8x32xf32> to vector<8x8xf32>
    %87 = vector.extract_strided_slice %83 {offsets = [0, 24], sizes = [8, 8], strides = [1, 1]} : vector<8x32xf32> to vector<8x8xf32>
    %88 = vector.shape_cast %79 : vector<8x8xf32> to vector<1x8x8xf32>
    %89 = vector.shape_cast %80 : vector<8x8xf32> to vector<1x8x8xf32>
    %90 = vector.shape_cast %81 : vector<8x8xf32> to vector<1x8x8xf32>
    %91 = vector.shape_cast %82 : vector<8x8xf32> to vector<1x8x8xf32>
    %92 = vector.shape_cast %84 : vector<8x8xf32> to vector<1x8x8xf32>
    %93 = vector.shape_cast %85 : vector<8x8xf32> to vector<1x8x8xf32>
    %94 = vector.shape_cast %86 : vector<8x8xf32> to vector<1x8x8xf32>
    %95 = vector.shape_cast %87 : vector<8x8xf32> to vector<1x8x8xf32>
    %96 = tpu.concatenate %88, %89, %90, %91, %92, %93, %94, %95 in 0 : vector<1x8x8xf32>, vector<1x8x8xf32>, vector<1x8x8xf32>, vector<1x8x8xf32>, vector<1x8x8xf32>, vector<1x8x8xf32>, vector<1x8x8xf32>, vector<1x8x8xf32> -> vector<8x8x8xf32>
    %97 = vector.extract_strided_slice %56 {offsets = [0, 64], sizes = [16, 32], strides = [1, 1]} : vector<16x128xf32> to vector<16x32xf32>
    %98 = vector.extract_strided_slice %97 {offsets = [0, 0], sizes = [8, 32], strides = [1, 1]} : vector<16x32xf32> to vector<8x32xf32>
    %99 = vector.extract_strided_slice %98 {offsets = [0, 0], sizes = [8, 8], strides = [1, 1]} : vector<8x32xf32> to vector<8x8xf32>
    %100 = vector.extract_strided_slice %98 {offsets = [0, 8], sizes = [8, 8], strides = [1, 1]} : vector<8x32xf32> to vector<8x8xf32>
    %101 = vector.extract_strided_slice %98 {offsets = [0, 16], sizes = [8, 8], strides = [1, 1]} : vector<8x32xf32> to vector<8x8xf32>
    %102 = vector.extract_strided_slice %98 {offsets = [0, 24], sizes = [8, 8], strides = [1, 1]} : vector<8x32xf32> to vector<8x8xf32>
    %103 = vector.extract_strided_slice %97 {offsets = [8, 0], sizes = [8, 32], strides = [1, 1]} : vector<16x32xf32> to vector<8x32xf32>
    %104 = vector.extract_strided_slice %103 {offsets = [0, 0], sizes = [8, 8], strides = [1, 1]} : vector<8x32xf32> to vector<8x8xf32>
    %105 = vector.extract_strided_slice %103 {offsets = [0, 8], sizes = [8, 8], strides = [1, 1]} : vector<8x32xf32> to vector<8x8xf32>
    %106 = vector.extract_strided_slice %103 {offsets = [0, 16], sizes = [8, 8], strides = [1, 1]} : vector<8x32xf32> to vector<8x8xf32>
    %107 = vector.extract_strided_slice %103 {offsets = [0, 24], sizes = [8, 8], strides = [1, 1]} : vector<8x32xf32> to vector<8x8xf32>
    %108 = vector.shape_cast %99 : vector<8x8xf32> to vector<1x8x8xf32>
    %109 = vector.shape_cast %100 : vector<8x8xf32> to vector<1x8x8xf32>
    %110 = vector.shape_cast %101 : vector<8x8xf32> to vector<1x8x8xf32>
    %111 = vector.shape_cast %102 : vector<8x8xf32> to vector<1x8x8xf32>
    %112 = vector.shape_cast %104 : vector<8x8xf32> to vector<1x8x8xf32>
    %113 = vector.shape_cast %105 : vector<8x8xf32> to vector<1x8x8xf32>
    %114 = vector.shape_cast %106 : vector<8x8xf32> to vector<1x8x8xf32>
    %115 = vector.shape_cast %107 : vector<8x8xf32> to vector<1x8x8xf32>
    %116 = tpu.concatenate %108, %109, %110, %111, %112, %113, %114, %115 in 0 : vector<1x8x8xf32>, vector<1x8x8xf32>, vector<1x8x8xf32>, vector<1x8x8xf32>, vector<1x8x8xf32>, vector<1x8x8xf32>, vector<1x8x8xf32>, vector<1x8x8xf32> -> vector<8x8x8xf32>
    "tpu.trace_start"() <{level = 10 : i32, message = "bqd,bkd->bqk"}> : () -> ()
    %cst_30 = arith.constant dense<0.000000e+00> : vector<8x8x8xf32>
    %117 = tpu.matmul %76, %96, %cst_30 {dimension_numbers = #tpu.dot_dimension_numbers<[2], [2], [1], [1], [0, 0, 0, 1, 1, 1], [0], [0]>} : vector<8x8x8xf32>, vector<8x8x8xf32>, vector<8x8x8xf32> -> vector<8x8x8xf32>
    "tpu.trace_stop"() : () -> ()
    %cst_31 = arith.constant 0.353553385 : f32
    %118 = vector.broadcast %cst_31 : f32 to vector<8x8x8xf32>
    %119 = arith.mulf %117, %118 : vector<8x8x8xf32>
    %cst_32 = arith.constant dense<0xFF800000> : vector<8x8xf32>
    %120 = vector.multi_reduction <maximumf>, %119, %cst_32 [2] : vector<8x8x8xf32> to vector<8x8xf32>
    %121 = vector.shape_cast %120 : vector<8x8xf32> to vector<8x8x1xf32>
    %122 = vector.broadcast %121 : vector<8x8x1xf32> to vector<8x8x8xf32>
    %123 = arith.subf %119, %122 : vector<8x8x8xf32>
    %124 = math.exp %123 : vector<8x8x8xf32>
    %cst_33 = arith.constant dense<0.000000e+00> : vector<8x8xf32>
    %125 = vector.multi_reduction <add>, %124, %cst_33 [2] : vector<8x8x8xf32> to vector<8x8xf32>
    %126 = vector.shape_cast %125 : vector<8x8xf32> to vector<8x8x1xf32>
    %127 = vector.broadcast %126 : vector<8x8x1xf32> to vector<8x8x8xf32>
    %128 = arith.divf %124, %127 : vector<8x8x8xf32>
    %129 = vector.extract_strided_slice %128 {offsets = [0, 0, 0], sizes = [1, 8, 8], strides = [1, 1, 1]} : vector<8x8x8xf32> to vector<1x8x8xf32>
    %130 = vector.shape_cast %129 : vector<1x8x8xf32> to vector<8x8xf32>
    %131 = vector.extract_strided_slice %128 {offsets = [1, 0, 0], sizes = [1, 8, 8], strides = [1, 1, 1]} : vector<8x8x8xf32> to vector<1x8x8xf32>
    %132 = vector.shape_cast %131 : vector<1x8x8xf32> to vector<8x8xf32>
    %133 = vector.extract_strided_slice %128 {offsets = [2, 0, 0], sizes = [1, 8, 8], strides = [1, 1, 1]} : vector<8x8x8xf32> to vector<1x8x8xf32>
    %134 = vector.shape_cast %133 : vector<1x8x8xf32> to vector<8x8xf32>
    %135 = vector.extract_strided_slice %128 {offsets = [3, 0, 0], sizes = [1, 8, 8], strides = [1, 1, 1]} : vector<8x8x8xf32> to vector<1x8x8xf32>
    %136 = vector.shape_cast %135 : vector<1x8x8xf32> to vector<8x8xf32>
    %137 = tpu.concatenate %130, %132, %134, %136 in 1 : vector<8x8xf32>, vector<8x8xf32>, vector<8x8xf32>, vector<8x8xf32> -> vector<8x32xf32>
    %138 = vector.extract_strided_slice %128 {offsets = [4, 0, 0], sizes = [1, 8, 8], strides = [1, 1, 1]} : vector<8x8x8xf32> to vector<1x8x8xf32>
    %139 = vector.shape_cast %138 : vector<1x8x8xf32> to vector<8x8xf32>
    %140 = vector.extract_strided_slice %128 {offsets = [5, 0, 0], sizes = [1, 8, 8], strides = [1, 1, 1]} : vector<8x8x8xf32> to vector<1x8x8xf32>
    %141 = vector.shape_cast %140 : vector<1x8x8xf32> to vector<8x8xf32>
    %142 = vector.extract_strided_slice %128 {offsets = [6, 0, 0], sizes = [1, 8, 8], strides = [1, 1, 1]} : vector<8x8x8xf32> to vector<1x8x8xf32>
    %143 = vector.shape_cast %142 : vector<1x8x8xf32> to vector<8x8xf32>
    %144 = vector.extract_strided_slice %128 {offsets = [7, 0, 0], sizes = [1, 8, 8], strides = [1, 1, 1]} : vector<8x8x8xf32> to vector<1x8x8xf32>
    %145 = vector.shape_cast %144 : vector<1x8x8xf32> to vector<8x8xf32>
    %146 = tpu.concatenate %139, %141, %143, %145 in 1 : vector<8x8xf32>, vector<8x8xf32>, vector<8x8xf32>, vector<8x8xf32> -> vector<8x32xf32>
    %147 = tpu.concatenate %137, %146 in 0 : vector<8x32xf32>, vector<8x32xf32> -> vector<16x32xf32>
    %c0_34 = arith.constant 0 : index
    %c0_35 = arith.constant 0 : index
    %148 = vector.load %arg22[%c0_34, %c0_35] : memref<16x32xf32, #tpu.memory_space<vmem>>, vector<16x32xf32>
    tpu.vector_store %arg22[%c0_34, %c0_35], %147 {strides = array<i32>} : memref<16x32xf32, #tpu.memory_space<vmem>>, vector<16x32xf32>,
    "tpu.trace_start"() <{level = 10 : i32, message = "bqk,bkd->bqd"}> : () -> ()
    %cst_36 = arith.constant dense<0.000000e+00> : vector<8x8x8xf32>
    %149 = tpu.matmul %128, %116, %cst_36 {dimension_numbers = #tpu.dot_dimension_numbers<[2], [1], [1], [2], [0, 0, 0, 1, 1, 2], [0], [0]>} : vector<8x8x8xf32>, vector<8x8x8xf32>, vector<8x8x8xf32> -> vector<8x8x8xf32>
    "tpu.trace_stop"() : () -> ()
    %150 = vector.extract_strided_slice %149 {offsets = [0, 0, 0], sizes = [1, 8, 8], strides = [1, 1, 1]} : vector<8x8x8xf32> to vector<1x8x8xf32>
    %151 = vector.shape_cast %150 : vector<1x8x8xf32> to vector<8x8xf32>
    %152 = vector.extract_strided_slice %149 {offsets = [1, 0, 0], sizes = [1, 8, 8], strides = [1, 1, 1]} : vector<8x8x8xf32> to vector<1x8x8xf32>
    %153 = vector.shape_cast %152 : vector<1x8x8xf32> to vector<8x8xf32>
    %154 = vector.extract_strided_slice %149 {offsets = [2, 0, 0], sizes = [1, 8, 8], strides = [1, 1, 1]} : vector<8x8x8xf32> to vector<1x8x8xf32>
    %155 = vector.shape_cast %154 : vector<1x8x8xf32> to vector<8x8xf32>
    %156 = vector.extract_strided_slice %149 {offsets = [3, 0, 0], sizes = [1, 8, 8], strides = [1, 1, 1]} : vector<8x8x8xf32> to vector<1x8x8xf32>
    %157 = vector.shape_cast %156 : vector<1x8x8xf32> to vector<8x8xf32>
    %158 = tpu.concatenate %151, %153, %155, %157 in 1 : vector<8x8xf32>, vector<8x8xf32>, vector<8x8xf32>, vector<8x8xf32> -> vector<8x32xf32>
    %159 = vector.extract_strided_slice %149 {offsets = [4, 0, 0], sizes = [1, 8, 8], strides = [1, 1, 1]} : vector<8x8x8xf32> to vector<1x8x8xf32>
    %160 = vector.shape_cast %159 : vector<1x8x8xf32> to vector<8x8xf32>
    %161 = vector.extract_strided_slice %149 {offsets = [5, 0, 0], sizes = [1, 8, 8], strides = [1, 1, 1]} : vector<8x8x8xf32> to vector<1x8x8xf32>
    %162 = vector.shape_cast %161 : vector<1x8x8xf32> to vector<8x8xf32>
    %163 = vector.extract_strided_slice %149 {offsets = [6, 0, 0], sizes = [1, 8, 8], strides = [1, 1, 1]} : vector<8x8x8xf32> to vector<1x8x8xf32>
    %164 = vector.shape_cast %163 : vector<1x8x8xf32> to vector<8x8xf32>
    %165 = vector.extract_strided_slice %149 {offsets = [7, 0, 0], sizes = [1, 8, 8], strides = [1, 1, 1]} : vector<8x8x8xf32> to vector<1x8x8xf32>
    %166 = vector.shape_cast %165 : vector<1x8x8xf32> to vector<8x8xf32>
    %167 = tpu.concatenate %160, %162, %164, %166 in 1 : vector<8x8xf32>, vector<8x8xf32>, vector<8x8xf32>, vector<8x8xf32> -> vector<8x32xf32>
    %168 = tpu.concatenate %158, %167 in 0 : vector<8x32xf32>, vector<8x32xf32> -> vector<16x32xf32>
    %c0_37 = arith.constant 0 : index
    %c0_38 = arith.constant 0 : index
    %169 = vector.load %arg11[%c0_37, %c0_38] : memref<32x32xf32, #tpu.memory_space<vmem>>, vector<32x32xf32>
    %cst_39 = arith.constant dense<0.000000e+00> : vector<16x32xf32>
    %170 = tpu.matmul %168, %169, %cst_39 {dimension_numbers = #tpu.dot_dimension_numbers<[1], [0], [0], [1], [0, 0, 1, 1], [], []>} : vector<16x32xf32>, vector<32x32xf32>, vector<16x32xf32> -> vector<16x32xf32>
    %c0_40 = arith.constant 0 : index
    %c0_41 = arith.constant 0 : index
    %171 = vector.load %arg12[%c0_40, %c0_41] : memref<1x32xf32, #tpu.memory_space<vmem>>, vector<1x32xf32>
    %172 = vector.broadcast %171 : vector<1x32xf32> to vector<16x32xf32>
    %173 = arith.addf %170, %172 : vector<16x32xf32>
    %174 = arith.addf %51, %173 : vector<16x32xf32>
    %c0_42 = arith.constant 0 : index
    %c0_43 = arith.constant 0 : index
    %175 = vector.load %arg13[%c0_42, %c0_43] : memref<1x32xf32, #tpu.memory_space<vmem>>, vector<1x32xf32>
    %c0_44 = arith.constant 0 : index
    %c0_45 = arith.constant 0 : index
    %176 = vector.load %arg14[%c0_44, %c0_45] : memref<1x32xf32, #tpu.memory_space<vmem>>, vector<1x32xf32>
    %cst_46 = arith.constant dense<0.000000e+00> : vector<16xf32>
    %177 = vector.multi_reduction <add>, %174, %cst_46 [1] : vector<16x32xf32> to vector<16xf32>
    %178 = vector.shape_cast %177 : vector<16xf32> to vector<16x1xf32>
    %cst_47 = arith.constant 3.200000e+01 : f32
    %179 = vector.broadcast %cst_47 : f32 to vector<16x1xf32>
    %180 = arith.divf %178, %179 : vector<16x1xf32>
    %181 = vector.broadcast %180 : vector<16x1xf32> to vector<16x32xf32>
    %182 = arith.subf %174, %181 : vector<16x32xf32>
    %183 = arith.mulf %182, %182 : vector<16x32xf32>
    %cst_48 = arith.constant dense<0.000000e+00> : vector<16xf32>
    %184 = vector.multi_reduction <add>, %183, %cst_48 [1] : vector<16x32xf32> to vector<16xf32>
    %185 = vector.shape_cast %184 : vector<16xf32> to vector<16x1xf32>
    %cst_49 = arith.constant 3.200000e+01 : f32
    %186 = vector.broadcast %cst_49 : f32 to vector<16x1xf32>
    %187 = arith.divf %185, %186 : vector<16x1xf32>
    %188 = vector.broadcast %180 : vector<16x1xf32> to vector<16x32xf32>
    %189 = arith.subf %174, %188 : vector<16x32xf32>
    %cst_50 = arith.constant 9.99999996E-13 : f32
    %190 = vector.broadcast %cst_50 : f32 to vector<16x1xf32>
    %191 = arith.addf %187, %190 : vector<16x1xf32>
    %192 = math.rsqrt %191 : vector<16x1xf32>
    %193 = vector.broadcast %192 : vector<16x1xf32> to vector<16x32xf32>
    %194 = arith.mulf %189, %193 : vector<16x32xf32>
    %195 = vector.broadcast %175 : vector<1x32xf32> to vector<16x32xf32>
    %196 = arith.mulf %194, %195 : vector<16x32xf32>
    %197 = vector.broadcast %176 : vector<1x32xf32> to vector<16x32xf32>
    %198 = arith.addf %196, %197 : vector<16x32xf32>
    %c0_51 = arith.constant 0 : index
    %c0_52 = arith.constant 0 : index
    %199 = vector.load %arg15[%c0_51, %c0_52] : memref<32x64xf32, #tpu.memory_space<vmem>>, vector<32x64xf32>
    %cst_53 = arith.constant dense<0.000000e+00> : vector<16x64xf32>
    %200 = tpu.matmul %198, %199, %cst_53 {dimension_numbers = #tpu.dot_dimension_numbers<[1], [0], [0], [1], [0, 0, 1, 1], [], []>} : vector<16x32xf32>, vector<32x64xf32>, vector<16x64xf32> -> vector<16x64xf32>
    %c0_54 = arith.constant 0 : index
    %c0_55 = arith.constant 0 : index
    %201 = vector.load %arg16[%c0_54, %c0_55] : memref<1x64xf32, #tpu.memory_space<vmem>>, vector<1x64xf32>
    %202 = vector.broadcast %201 : vector<1x64xf32> to vector<16x64xf32>
    %203 = arith.addf %200, %202 : vector<16x64xf32>
    %204 = arith.mulf %203, %203 : vector<16x64xf32>
    %205 = arith.mulf %203, %204 : vector<16x64xf32>
    %cst_56 = arith.constant 4.471500e-02 : f32
    %206 = vector.broadcast %cst_56 : f32 to vector<16x64xf32>
    %207 = arith.mulf %206, %205 : vector<16x64xf32>
    %208 = arith.addf %203, %207 : vector<16x64xf32>
    %cst_57 = arith.constant 0.797884583 : f32
    %209 = vector.broadcast %cst_57 : f32 to vector<16x64xf32>
    %210 = arith.mulf %209, %208 : vector<16x64xf32>
    %211 = math.tanh %210 : vector<16x64xf32>
    %cst_58 = arith.constant 1.000000e+00 : f32
    %212 = vector.broadcast %cst_58 : f32 to vector<16x64xf32>
    %213 = arith.addf %212, %211 : vector<16x64xf32>
    %cst_59 = arith.constant 5.000000e-01 : f32
    %214 = vector.broadcast %cst_59 : f32 to vector<16x64xf32>
    %215 = arith.mulf %214, %213 : vector<16x64xf32>
    %216 = arith.mulf %203, %215 : vector<16x64xf32>
    %c0_60 = arith.constant 0 : index
    %c0_61 = arith.constant 0 : index
    %217 = vector.load %arg17[%c0_60, %c0_61] : memref<64x32xf32, #tpu.memory_space<vmem>>, vector<64x32xf32>
    %cst_62 = arith.constant dense<0.000000e+00> : vector<16x32xf32>
    %218 = tpu.matmul %216, %217, %cst_62 {dimension_numbers = #tpu.dot_dimension_numbers<[1], [0], [0], [1], [0, 0, 1, 1], [], []>} : vector<16x64xf32>, vector<64x32xf32>, vector<16x32xf32> -> vector<16x32xf32>
    %c0_63 = arith.constant 0 : index
    %c0_64 = arith.constant 0 : index
    %219 = vector.load %arg18[%c0_63, %c0_64] : memref<1x32xf32, #tpu.memory_space<vmem>>, vector<1x32xf32>
    %220 = vector.broadcast %219 : vector<1x32xf32> to vector<16x32xf32>
    %221 = arith.addf %218, %220 : vector<16x32xf32>
    %222 = arith.addf %198, %221 : vector<16x32xf32>
    %c0_65 = arith.constant 0 : index
    %c0_66 = arith.constant 0 : index
    %223 = vector.load %arg19[%c0_65, %c0_66] : memref<1x32xf32, #tpu.memory_space<vmem>>, vector<1x32xf32>
    %c0_67 = arith.constant 0 : index
    %c0_68 = arith.constant 0 : index
    %224 = vector.load %arg20[%c0_67, %c0_68] : memref<1x32xf32, #tpu.memory_space<vmem>>, vector<1x32xf32>
    %cst_69 = arith.constant dense<0.000000e+00> : vector<16xf32>
    %225 = vector.multi_reduction <add>, %222, %cst_69 [1] : vector<16x32xf32> to vector<16xf32>
    %226 = vector.shape_cast %225 : vector<16xf32> to vector<16x1xf32>
    %cst_70 = arith.constant 3.200000e+01 : f32
    %227 = vector.broadcast %cst_70 : f32 to vector<16x1xf32>
    %228 = arith.divf %226, %227 : vector<16x1xf32>
    %229 = vector.broadcast %228 : vector<16x1xf32> to vector<16x32xf32>
    %230 = arith.subf %222, %229 : vector<16x32xf32>
    %231 = arith.mulf %230, %230 : vector<16x32xf32>
    %cst_71 = arith.constant dense<0.000000e+00> : vector<16xf32>
    %232 = vector.multi_reduction <add>, %231, %cst_71 [1] : vector<16x32xf32> to vector<16xf32>
    %233 = vector.shape_cast %232 : vector<16xf32> to vector<16x1xf32>
    %cst_72 = arith.constant 3.200000e+01 : f32
    %234 = vector.broadcast %cst_72 : f32 to vector<16x1xf32>
    %235 = arith.divf %233, %234 : vector<16x1xf32>
    %236 = vector.broadcast %228 : vector<16x1xf32> to vector<16x32xf32>
    %237 = arith.subf %222, %236 : vector<16x32xf32>
    %cst_73 = arith.constant 9.99999996E-13 : f32
    %238 = vector.broadcast %cst_73 : f32 to vector<16x1xf32>
    %239 = arith.addf %235, %238 : vector<16x1xf32>
    %240 = math.rsqrt %239 : vector<16x1xf32>
    %241 = vector.broadcast %240 : vector<16x1xf32> to vector<16x32xf32>
    %242 = arith.mulf %237, %241 : vector<16x32xf32>
    %243 = vector.broadcast %223 : vector<1x32xf32> to vector<16x32xf32>
    %244 = arith.mulf %242, %243 : vector<16x32xf32>
    %245 = vector.broadcast %224 : vector<1x32xf32> to vector<16x32xf32>
    %246 = arith.addf %244, %245 : vector<16x32xf32>
    %c0_74 = arith.constant 0 : index
    %c0_75 = arith.constant 0 : index
    %247 = vector.load %arg21[%c0_74, %c0_75] : memref<16x32xf32, #tpu.memory_space<vmem>>, vector<16x32xf32>
    tpu.vector_store %arg21[%c0_74, %c0_75], %246 {strides = array<i32>} : memref<16x32xf32, #tpu.memory_space<vmem>>, vector<16x32xf32>,
    return
  }
}

</mosaic_0001>

<llo_original>
// kernel: object_encoder_forward.1
$region0: #{object_encoder_forward.1}
  #allocation0 [shape = 'u32[]', space=smem, size = 0x4, offset = 0x4, fixed_abs, tag = 'smem constant byte address 0x4 - core index']
  #allocation1 [shape = 'u32[144,128]{1,0:T(1,128)}', space=vmem, size = 0x12000, scoped, tag = 'internal scratch']
  %s0 = inlined_call_operand.vmem [shape: f32[16,32], index: 0, kind: input, shape index: {}]
  %s1 = inlined_call_operand.vmem [shape: f32[16,1], index: 1, kind: input, shape index: {}]
  %s2 = inlined_call_operand.vmem [shape: f32[16,1], index: 2, kind: input, shape index: {}]
  %s3 = inlined_call_operand.vmem [shape: f32[1,32], index: 3, kind: input, shape index: {}]
  %s4 = inlined_call_operand.vmem [shape: f32[1,32], index: 4, kind: input, shape index: {}]
  %s5 = inlined_call_operand.vmem [shape: f32[32,32], index: 5, kind: input, shape index: {}]
  %s6 = inlined_call_operand.vmem [shape: f32[1,32], index: 6, kind: input, shape index: {}]
  %s7 = inlined_call_operand.vmem [shape: f32[1,32], index: 7, kind: input, shape index: {}]
  %s8 = inlined_call_operand.vmem [shape: f32[1,32], index: 8, kind: input, shape index: {}]
  %s9 = inlined_call_operand.vmem [shape: f32[32,128], index: 9, kind: input, shape index: {}]
  %s10 = inlined_call_operand.vmem [shape: f32[1,128], index: 10, kind: input, shape index: {}]
  %s11 = inlined_call_operand.vmem [shape: f32[32,32], index: 11, kind: input, shape index: {}]
  %s12 = inlined_call_operand.vmem [shape: f32[1,32], index: 12, kind: input, shape index: {}]
  %s13 = inlined_call_operand.vmem [shape: f32[1,32], index: 13, kind: input, shape index: {}]
  %s14 = inlined_call_operand.vmem [shape: f32[1,32], index: 14, kind: input, shape index: {}]
  %s15 = inlined_call_operand.vmem [shape: f32[32,64], index: 15, kind: input, shape index: {}]
  %s16 = inlined_call_operand.vmem [shape: f32[1,64], index: 16, kind: input, shape index: {}]
  %s17 = inlined_call_operand.vmem [shape: f32[64,32], index: 17, kind: input, shape index: {}]
  %s18 = inlined_call_operand.vmem [shape: f32[1,32], index: 18, kind: input, shape index: {}]
  %s19 = inlined_call_operand.vmem [shape: f32[1,32], index: 19, kind: input, shape index: {}]
  %s20 = inlined_call_operand.vmem [shape: f32[1,32], index: 20, kind: input, shape index: {}]
  %s21 = inlined_call_operand.hbm [shape: f32[16,32], index: 21, kind: output, shape index: {0}]
  %s22 = inlined_call_operand.vmem [shape: f32[16,32], index: 22, kind: output, shape index: {1}]
  %23 = xla_tuple %s21, %s22
  %s24 = sld [smem:[#allocation0]]
  $region102: #{object_encoder_forward.1} parent=0
    _
  %s26 = ssub.s32 1, %s24
  %s27 = scalar_select 0, %s26, %s24
  $region1: #{object_encoder_forward.1} parent=0
    #allocation2 [shape = 'u8[8192]{0}', space=vmem, size = 0x2000, scoped, tag = 'output window, operand 0, single buffered']
    #allocation3 [shape = 's32[1]{0}', space=sflag, size = 0x4, scoped, tag = 'scoped memory for object_encoder_forward.1']
    %28 = vsyncpa [#allocation3], 0
    // Predicated region
    $region2: #{object_encoder_forward.1} parent=1 // pred_check
      _
    $region3: #{object_encoder_forward.1} parent=1 // pred_check_branch
      %30 = sbr.rel (0) target = $region5
    $region4: #{object_encoder_forward.1} parent=1 // pred_region
      _
    $region5: #{object_encoder_forward.1} parent=1 // pred_fallthru
      _
    // Predicated region
    $region6: #{object_encoder_forward.1} parent=1 // pred_check
      _
    $region7: #{object_encoder_forward.1} parent=1 // pred_check_branch
      %32 = sbr.rel (0) target = $region9
    $region8: #{object_encoder_forward.1} parent=1 // pred_region
      _
    $region9: #{object_encoder_forward.1} parent=1 // pred_fallthru
      _
    // Predicated region
    $region10: #{object_encoder_forward.1} parent=1 // pred_check
      _
    $region11: #{object_encoder_forward.1} parent=1 // pred_check_branch
      %34 = sbr.rel (0) target = $region13
    $region12: #{object_encoder_forward.1} parent=1 // pred_region
      _
    $region13: #{object_encoder_forward.1} parent=1 // pred_fallthru
      _
    // Predicated region
    $region14: #{object_encoder_forward.1} parent=1 // pred_check
      _
    $region15: #{object_encoder_forward.1} parent=1 // pred_check_branch
      %36 = sbr.rel (0) target = $region17
    $region16: #{object_encoder_forward.1} parent=1 // pred_region
      _
    $region17: #{object_encoder_forward.1} parent=1 // pred_fallthru
      _
    // Predicated region
    $region18: #{object_encoder_forward.1} parent=1 // pred_check
      _
    $region19: #{object_encoder_forward.1} parent=1 // pred_check_branch
      %38 = sbr.rel (0) target = $region21
    $region20: #{object_encoder_forward.1} parent=1 // pred_region
      _
    $region21: #{object_encoder_forward.1} parent=1 // pred_fallthru
      _
    // Predicated region
    $region22: #{object_encoder_forward.1} parent=1 // pred_check
      _
    $region23: #{object_encoder_forward.1} parent=1 // pred_check_branch
      %40 = sbr.rel (0) target = $region25
    $region24: #{object_encoder_forward.1} parent=1 // pred_region
      _
    $region25: #{object_encoder_forward.1} parent=1 // pred_fallthru
      _
    // Predicated region
    $region26: #{object_encoder_forward.1} parent=1 // pred_check
      _
    $region27: #{object_encoder_forward.1} parent=1 // pred_check_branch
      %42 = sbr.rel (0) target = $region29
    $region28: #{object_encoder_forward.1} parent=1 // pred_region
      _
    $region29: #{object_encoder_forward.1} parent=1 // pred_fallthru
      _
    // Predicated region
    $region30: #{object_encoder_forward.1} parent=1 // pred_check
      _
    $region31: #{object_encoder_forward.1} parent=1 // pred_check_branch
      %44 = sbr.rel (0) target = $region33
    $region32: #{object_encoder_forward.1} parent=1 // pred_region
      _
    $region33: #{object_encoder_forward.1} parent=1 // pred_fallthru
      _
    // Predicated region
    $region34: #{object_encoder_forward.1} parent=1 // pred_check
      _
    $region35: #{object_encoder_forward.1} parent=1 // pred_check_branch
      %46 = sbr.rel (0) target = $region37
    $region36: #{object_encoder_forward.1} parent=1 // pred_region
      _
    $region37: #{object_encoder_forward.1} parent=1 // pred_fallthru
      _
    // Predicated region
    $region38: #{object_encoder_forward.1} parent=1 // pred_check
      _
    $region39: #{object_encoder_forward.1} parent=1 // pred_check_branch
      %48 = sbr.rel (0) target = $region41
    $region40: #{object_encoder_forward.1} parent=1 // pred_region
      _
    $region41: #{object_encoder_forward.1} parent=1 // pred_fallthru
      _
    // Predicated region
    $region42: #{object_encoder_forward.1} parent=1 // pred_check
      _
    $region43: #{object_encoder_forward.1} parent=1 // pred_check_branch
      %50 = sbr.rel (0) target = $region45
    $region44: #{object_encoder_forward.1} parent=1 // pred_region
      _
    $region45: #{object_encoder_forward.1} parent=1 // pred_fallthru
      _
    // Predicated region
    $region46: #{object_encoder_forward.1} parent=1 // pred_check
      _
    $region47: #{object_encoder_forward.1} parent=1 // pred_check_branch
      %52 = sbr.rel (0) target = $region49
    $region48: #{object_encoder_forward.1} parent=1 // pred_region
      _
    $region49: #{object_encoder_forward.1} parent=1 // pred_fallthru
      _
    // Predicated region
    $region50: #{object_encoder_forward.1} parent=1 // pred_check
      _
    $region51: #{object_encoder_forward.1} parent=1 // pred_check_branch
      %54 = sbr.rel (0) target = $region53
    $region52: #{object_encoder_forward.1} parent=1 // pred_region
      _
    $region53: #{object_encoder_forward.1} parent=1 // pred_fallthru
      _
    // Predicated region
    $region54: #{object_encoder_forward.1} parent=1 // pred_check
      _
    $region55: #{object_encoder_forward.1} parent=1 // pred_check_branch
      %56 = sbr.rel (0) target = $region57
    $region56: #{object_encoder_forward.1} parent=1 // pred_region
      _
    $region57: #{object_encoder_forward.1} parent=1 // pred_fallthru
      _
    // Predicated region
    $region58: #{object_encoder_forward.1} parent=1 // pred_check
      _
    $region59: #{object_encoder_forward.1} parent=1 // pred_check_branch
      %58 = sbr.rel (0) target = $region61
    $region60: #{object_encoder_forward.1} parent=1 // pred_region
      _
    $region61: #{object_encoder_forward.1} parent=1 // pred_fallthru
      _
    // Predicated region
    $region62: #{object_encoder_forward.1} parent=1 // pred_check
      _
    $region63: #{object_encoder_forward.1} parent=1 // pred_check_branch
      %60 = sbr.rel (0) target = $region65
    $region64: #{object_encoder_forward.1} parent=1 // pred_region
      _
    $region65: #{object_encoder_forward.1} parent=1 // pred_fallthru
      _
    // Predicated region
    $region66: #{object_encoder_forward.1} parent=1 // pred_check
      _
    $region67: #{object_encoder_forward.1} parent=1 // pred_check_branch
      %62 = sbr.rel (0) target = $region69
    $region68: #{object_encoder_forward.1} parent=1 // pred_region
      _
    $region69: #{object_encoder_forward.1} parent=1 // pred_fallthru
      _
    // Predicated region
    $region70: #{object_encoder_forward.1} parent=1 // pred_check
      _
    $region71: #{object_encoder_forward.1} parent=1 // pred_check_branch
      %64 = sbr.rel (0) target = $region73
    $region72: #{object_encoder_forward.1} parent=1 // pred_region
      _
    $region73: #{object_encoder_forward.1} parent=1 // pred_fallthru
      _
    // Predicated region
    $region74: #{object_encoder_forward.1} parent=1 // pred_check
      _
    $region75: #{object_encoder_forward.1} parent=1 // pred_check_branch
      %66 = sbr.rel (0) target = $region77
    $region76: #{object_encoder_forward.1} parent=1 // pred_region
      _
    $region77: #{object_encoder_forward.1} parent=1 // pred_fallthru
      _
    // Predicated region
    $region78: #{object_encoder_forward.1} parent=1 // pred_check
      _
    $region79: #{object_encoder_forward.1} parent=1 // pred_check_branch
      %68 = sbr.rel (0) target = $region81
    $region80: #{object_encoder_forward.1} parent=1 // pred_region
      _
    $region81: #{object_encoder_forward.1} parent=1 // pred_fallthru
      _
    // Predicated region
    $region82: #{object_encoder_forward.1} parent=1 // pred_check
      _
    $region83: #{object_encoder_forward.1} parent=1 // pred_check_branch
      %70 = sbr.rel (0) target = $region85
    $region84: #{object_encoder_forward.1} parent=1 // pred_region
      _
    $region85: #{object_encoder_forward.1} parent=1 // pred_fallthru
      _
    %v71 = vld [vmem:[%s0] sm:$0xff]
    %v72 = vld [vmem:[%s0 + $0x8] sm:$0xff]
    %v73 = vld [vmem:[%s1] sm:$0xff]
    %v74 = vld [vmem:[%s1 + $0x8] sm:$0xff]
    %v75 = vld [vmem:[%s2] sm:$0xff]
    %v76 = vld [vmem:[%s2 + $0x8] sm:$0xff]
    %v77 = vld [vmem:[%s3] sm:$0x1]
    %79 = vset.pattern.permute.xlu0 0
    %80 = vperm.xlu0 %79, %v73
    %v81 = vpop.permute.xlu0 %80
    %84 = vset.pattern.permute.xlu0 0
    %85 = vperm.xlu0 %84, %v74
    %v86 = vpop.permute.xlu0 %85
    %v89 = vlaneseq
    %v90 = vshrl.u32 %v89, 7
    %v91 = vsub.s32 0, %v90
    %v92 = vrot.slane %v77, %v91
    %v94 = vmul.f32 %v81, %v92
    %v95 = vmul.f32 %v86, %v92
    %v96 = vsub.f32 1.0, %v73
    %v97 = vsub.f32 1.0, %v74
    %99 = vset.pattern.permute.xlu0 0
    %100 = vperm.xlu0 %99, %v96
    %v101 = vpop.permute.xlu0 %100
    %104 = vset.pattern.permute.xlu0 0
    %105 = vperm.xlu0 %104, %v97
    %v106 = vpop.permute.xlu0 %105
    %v108 = vmul.f32 %v101, %v71
    %v109 = vmul.f32 %v106, %v72
    %v110 = vadd.f32 %v94, %v108
    %v111 = vadd.f32 %v95, %v109
    %v112 = vld [vmem:[%s4] sm:$0x1]
    %114 = vset.pattern.permute.xlu0 0
    %115 = vperm.xlu0 %114, %v75
    %v116 = vpop.permute.xlu0 %115
    %119 = vset.pattern.permute.xlu0 0
    %120 = vperm.xlu0 %119, %v76
    %v121 = vpop.permute.xlu0 %120
    %v124 = vlaneseq
    %v125 = vshrl.u32 %v124, 7
    %v126 = vsub.s32 0, %v125
    %v127 = vrot.slane %v112, %v126
    %v129 = vmul.f32 %v116, %v127
    %v130 = vmul.f32 %v121, %v127
    %v131 = vsub.f32 1.0, %v75
    %v132 = vsub.f32 1.0, %v76
    %134 = vset.pattern.permute.xlu0 0
    %135 = vperm.xlu0 %134, %v131
    %v136 = vpop.permute.xlu0 %135
    %139 = vset.pattern.permute.xlu0 0
    %140 = vperm.xlu0 %139, %v132
    %v141 = vpop.permute.xlu0 %140
    %v143 = vmul.f32 %v136, %v110
    %v144 = vmul.f32 %v141, %v111
    %v145 = vadd.f32 %v129, %v143
    %v146 = vadd.f32 %v130, %v144
    %v147 = vld [vmem:[%s5] sm:$0xff]
    %v148 = vld [vmem:[%s5 + $0x8] sm:$0xff]
    %v149 = vld [vmem:[%s5 + $0x10] sm:$0xff]
    %v150 = vld [vmem:[%s5 + $0x18] sm:$0xff]
    %v151 = vld [vmem:[%s6] sm:$0x1]
    %v153 = vlaneseq
    %v154 = vshrl.u32 %v153, 7
    %v155 = vsub.s32 0, %v154
    %v156 = vrot.slane %v151, %v155
    %vm158 = vcmask 261120
    %v160 = vsel %vm158, %v145, 0
    %v163 = vsel %vm158, %v146, 0
    %165 = vmatprep.subr.mxu0 0.0
    %166 = vmatpush1.msra.mxu0 %v147
    %167 = vmatprep.subr.mxu0 0.0
    %168 = vmatpush1.msra.mxu0 %v148
    %169 = vmatprep.subr.mxu0 0.0
    %170 = vmatpush1.msra.mxu0 %v149
    %171 = vmatprep.subr.mxu0 0.0
    %172 = vmatpush1.msra.mxu0 %v150
    %173 = vmatprep.subr.mxu0 0.0
    %174 = vmatpush1.msra.mxu0 0.0
    %175 = vmatprep.subr.mxu0 0.0
    %176 = vmatpush1.msra.mxu0 0.0
    %177 = vmatprep.subr.mxu0 0.0
    %178 = vmatpush1.msra.mxu0 0.0
    %179 = vmatprep.subr.mxu0 0.0
    %180 = vmatpush1.msra.mxu0 0.0
    %181 = vmatprep.subr.mxu0 0.0
    %182 = vmatpush1.msra.mxu0 0.0
    %183 = vmatprep.subr.mxu0 0.0
    %184 = vmatpush1.msra.mxu0 0.0
    %185 = vmatprep.subr.mxu0 0.0
    %186 = vmatpush1.msra.mxu0 0.0
    %187 = vmatprep.subr.mxu0 0.0
    %188 = vmatpush1.msra.mxu0 0.0
    %189 = vmatprep.subr.mxu0 0.0
    %190 = vmatpush1.msra.mxu0 0.0
    %191 = vmatprep.subr.mxu0 0.0
    %192 = vmatpush1.msra.mxu0 0.0
    %193 = vmatprep.subr.mxu0 0.0
    %194 = vmatpush1.msra.mxu0 0.0
    %195 = vmatprep.subr.mxu0 0.0
    %196 = vmatpush1.msra.mxu0 0.0
    %197 = vmatprep.subr.mxu0 0.0
    %198 = vmatpush1.msra.mxu0 0.0
    %199 = vmatprep.subr.mxu0 0.0
    %200 = vmatpush1.msra.mxu0 0.0
    %201 = vmatprep.subr.mxu0 0.0
    %202 = vmatpush1.msra.mxu0 0.0
    %203 = vmatprep.subr.mxu0 0.0
    %204 = vmatpush1.msra.mxu0 0.0
    %205 = vmatprep.subr.mxu0 0.0
    %206 = vmatpush1.msra.mxu0 0.0
    %207 = vmatprep.subr.mxu0 0.0
    %208 = vmatpush1.msra.mxu0 0.0
    %209 = vmatprep.subr.mxu0 0.0
    %210 = vmatpush1.msra.mxu0 0.0
    %211 = vmatprep.subr.mxu0 0.0
    %212 = vmatpush1.msra.mxu0 0.0
    %213 = vmatprep.subr.mxu0 0.0
    %214 = vmatpush1.msra.mxu0 0.0
    %215 = vmatprep.subr.mxu0 0.0
    %216 = vmatpush1.msra.mxu0 0.0
    %217 = vmatprep.subr.mxu0 0.0
    %218 = vmatpush1.msra.mxu0 0.0
    %219 = vmatprep.subr.mxu0 0.0
    %220 = vmatpush1.msra.mxu0 0.0
    %221 = vmatprep.subr.mxu0 0.0
    %222 = vmatpush1.msra.mxu0 0.0
    %223 = vmatprep.subr.mxu0 0.0
    %224 = vmatpush1.msra.mxu0 0.0
    %225 = vmatprep.subr.mxu0 0.0
    %226 = vmatpush1.msra.mxu0 0.0
    %227 = vmatprep.subr.mxu0 0.0
    %228 = vmatpush1.msra.mxu0 0.0
    %229 = vmatprep.mubr.f32.mxu0 0.0
    %230 = vmatmul.mubr.f32.gmra.mrb[0].mxu0 %v160
    %v231 = vpop.f32.mrb[0].mxu0
    %v232 = vadd.f32 %v156, %v231
    %v233 = vpop.f32.mrb[0].mxu0
    %234 = vmatprep.mubr.f32.mxu0 0.0
    %235 = vmatmul.mubr.f32.gmra.mrb[0].mxu0 %v163
    %v236 = vpop.f32.mrb[0].mxu0
    %v237 = vadd.f32 %v156, %v236
    %v238 = vpop.f32.mrb[0].mxu0
    %239 = vdwg.mxu0
    %v240 = vsel %vm158, %v232, 0.0
    %v241 = vsel %vm158, %v237, 0.0
    %v242 = vadd.f32 %v240, %v241
    %v243 = vrot.slane %v242, 4
    %v244 = vadd.f32 %v242, %v243
    %v245 = vrot.slane %v244, 2
    %v246 = vadd.f32 %v244, %v245
    %v247 = vrot.slane %v246, 1
    %v248 = vadd.f32 %v246, %v247
    %v249 = vrcp.pop 16.0
    %v250 = vmul.f32 %v248, %v249
    %v251 = vsub.f32 %v232, %v250
    %v252 = vsub.f32 %v237, %v250
    %v253 = vmul.f32 %v251, %v251
    %v254 = vmul.f32 %v252, %v252
    %v255 = vsel %vm158, %v253, 0.0
    %v256 = vsel %vm158, %v254, 0.0
    %v257 = vadd.f32 %v255, %v256
    %v258 = vrot.slane %v257, 4
    %v259 = vadd.f32 %v257, %v258
    %v260 = vrot.slane %v259, 2
    %v261 = vadd.f32 %v259, %v260
    %v262 = vrot.slane %v261, 1
    %v263 = vadd.f32 %v261, %v262
    %v264 = vmul.f32 %v263, %v249
    %v265 = vadd.f32 %v264, 1e-05
    %v266 = vrsqrt.pop %v265
    %v267 = vmul.f32 %v251, %v266
    %v268 = vmul.f32 %v252, %v266
    %v269 = vld [vmem:[%s7] sm:$0x1]
    %v271 = vlaneseq
    %v272 = vshrl.u32 %v271, 7
    %v273 = vsub.s32 0, %v272
    %v274 = vrot.slane %v269, %v273
    %v276 = vmul.f32 %v267, %v274
    %v277 = vmul.f32 %v268, %v274
    %v278 = vld [vmem:[%s8] sm:$0x1]
    %v280 = vlaneseq
    %v281 = vshrl.u32 %v280, 7
    %v282 = vsub.s32 0, %v281
    %v283 = vrot.slane %v278, %v282
    %v285 = vadd.f32 %v276, %v283
    %v286 = vadd.f32 %v277, %v283
    %v287 = vmax.f32 %v285, 0.0
    %v288 = vmax.f32 %v286, 0.0
    %v289 = vld [vmem:[%s9] sm:$0xff]
    %v290 = vld [vmem:[%s9 + $0x8] sm:$0xff]
    %v291 = vld [vmem:[%s9 + $0x10] sm:$0xff]
    %v292 = vld [vmem:[%s9 + $0x18] sm:$0xff]
    %v293 = vld [vmem:[%s10] sm:$0x1]
    %v295 = vlaneseq
    %v296 = vshrl.u32 %v295, 7
    %v297 = vsub.s32 0, %v296
    %v298 = vrot.slane %v293, %v297
    %v301 = vsel %vm158, %v287, 0
    %v304 = vsel %vm158, %v288, 0
    %306 = vmatprep.subr.mxu0 0.0
    %307 = vmatpush1.msra.mxu0 %v289
    %308 = vmatprep.subr.mxu0 0.0
    %309 = vmatpush1.msra.mxu0 %v290
    %310 = vmatprep.subr.mxu0 0.0
    %311 = vmatpush1.msra.mxu0 %v291
    %312 = vmatprep.subr.mxu0 0.0
    %313 = vmatpush1.msra.mxu0 %v292
    %314 = vmatprep.subr.mxu0 0.0
    %315 = vmatpush1.msra.mxu0 0.0
    %316 = vmatprep.subr.mxu0 0.0
    %317 = vmatpush1.msra.mxu0 0.0
    %318 = vmatprep.subr.mxu0 0.0
    %319 = vmatpush1.msra.mxu0 0.0
    %320 = vmatprep.subr.mxu0 0.0
    %321 = vmatpush1.msra.mxu0 0.0
    %322 = vmatprep.subr.mxu0 0.0
    %323 = vmatpush1.msra.mxu0 0.0
    %324 = vmatprep.subr.mxu0 0.0
    %325 = vmatpush1.msra.mxu0 0.0
    %326 = vmatprep.subr.mxu0 0.0
    %327 = vmatpush1.msra.mxu0 0.0
    %328 = vmatprep.subr.mxu0 0.0
    %329 = vmatpush1.msra.mxu0 0.0
    %330 = vmatprep.subr.mxu0 0.0
    %331 = vmatpush1.msra.mxu0 0.0
    %332 = vmatprep.subr.mxu0 0.0
    %333 = vmatpush1.msra.mxu0 0.0
    %334 = vmatprep.subr.mxu0 0.0
    %335 = vmatpush1.msra.mxu0 0.0
    %336 = vmatprep.subr.mxu0 0.0
    %337 = vmatpush1.msra.mxu0 0.0
    %338 = vmatprep.subr.mxu0 0.0
    %339 = vmatpush1.msra.mxu0 0.0
    %340 = vmatprep.subr.mxu0 0.0
    %341 = vmatpush1.msra.mxu0 0.0
    %342 = vmatprep.subr.mxu0 0.0
    %343 = vmatpush1.msra.mxu0 0.0
    %344 = vmatprep.subr.mxu0 0.0
    %345 = vmatpush1.msra.mxu0 0.0
    %346 = vmatprep.subr.mxu0 0.0
    %347 = vmatpush1.msra.mxu0 0.0
    %348 = vmatprep.subr.mxu0 0.0
    %349 = vmatpush1.msra.mxu0 0.0
    %350 = vmatprep.subr.mxu0 0.0
    %351 = vmatpush1.msra.mxu0 0.0
    %352 = vmatprep.subr.mxu0 0.0
    %353 = vmatpush1.msra.mxu0 0.0
    %354 = vmatprep.subr.mxu0 0.0
    %355 = vmatpush1.msra.mxu0 0.0
    %356 = vmatprep.subr.mxu0 0.0
    %357 = vmatpush1.msra.mxu0 0.0
    %358 = vmatprep.subr.mxu0 0.0
    %359 = vmatpush1.msra.mxu0 0.0
    %360 = vmatprep.subr.mxu0 0.0
    %361 = vmatpush1.msra.mxu0 0.0
    %362 = vmatprep.subr.mxu0 0.0
    %363 = vmatpush1.msra.mxu0 0.0
    %364 = vmatprep.subr.mxu0 0.0
    %365 = vmatpush1.msra.mxu0 0.0
    %366 = vmatprep.subr.mxu0 0.0
    %367 = vmatpush1.msra.mxu0 0.0
    %368 = vmatprep.subr.mxu0 0.0
    %369 = vmatpush1.msra.mxu0 0.0
    %370 = vmatprep.mubr.f32.mxu0 0.0
    %371 = vmatmul.mubr.f32.gmra.mrb[0].mxu0 %v301
    %v372 = vpop.f32.mrb[0].mxu0
    %v373 = vadd.f32 %v298, %v372
    %v374 = vpop.f32.mrb[0].mxu0
    %375 = vmatprep.mubr.f32.mxu0 0.0
    %376 = vmatmul.mubr.f32.gmra.mrb[0].mxu0 %v304
    %v377 = vpop.f32.mrb[0].mxu0
    %v378 = vadd.f32 %v298, %v377
    %v379 = vpop.f32.mrb[0].mxu0
    %380 = vdwg.mxu0
    %382 = vrot.lane.b32.xlu0 %v373, 120
    %v383 = vpop.permute.xlu0 %382
    %384 = vrot.lane.b32.xlu0 %v373, 112
    %v385 = vpop.permute.xlu0 %384
    %386 = vrot.lane.b32.xlu0 %v373, 104
    %v387 = vpop.permute.xlu0 %386
    %389 = vrot.lane.b32.xlu0 %v378, 120
    %v390 = vpop.permute.xlu0 %389
    %391 = vrot.lane.b32.xlu0 %v378, 112
    %v392 = vpop.permute.xlu0 %391
    %393 = vrot.lane.b32.xlu0 %v378, 104
    %v394 = vpop.permute.xlu0 %393
    %395 = vrot.lane.b32.xlu0 %v373, 96
    %v396 = vpop.permute.xlu0 %395
    %vm397 = vcmask 64512
    %v398 = vsel %vm397, %v373, 0
    %v400 = vsel %vm397, %v396, 0
    %402 = vmatprep.subr.mxu0 0.0
    %403 = vmatpush1.xpose.msra.mxu0 %v400
    %404 = vmatprep.subr.mxu0 0.0
    %405 = vmatpush1.xpose.msra.mxu0 0.0
    %406 = vmatprep.subr.mxu0 0.0
    %407 = vmatpush1.xpose.msra.mxu0 0.0
    %408 = vmatprep.subr.mxu0 0.0
    %409 = vmatpush1.xpose.msra.mxu0 0.0
    %410 = vmatprep.subr.mxu0 0.0
    %411 = vmatpush1.xpose.msra.mxu0 0.0
    %412 = vmatprep.subr.mxu0 0.0
    %413 = vmatpush1.xpose.msra.mxu0 0.0
    %414 = vmatprep.subr.mxu0 0.0
    %415 = vmatpush1.xpose.msra.mxu0 0.0
    %416 = vmatprep.subr.mxu0 0.0
    %417 = vmatpush1.xpose.msra.mxu0 0.0
    %418 = vmatprep.subr.mxu0 0.0
    %419 = vmatpush1.xpose.msra.mxu0 0.0
    %420 = vmatprep.subr.mxu0 0.0
    %421 = vmatpush1.xpose.msra.mxu0 0.0
    %422 = vmatprep.subr.mxu0 0.0
    %423 = vmatpush1.xpose.msra.mxu0 0.0
    %424 = vmatprep.subr.mxu0 0.0
    %425 = vmatpush1.xpose.msra.mxu0 0.0
    %426 = vmatprep.subr.mxu0 0.0
    %427 = vmatpush1.xpose.msra.mxu0 0.0
    %428 = vmatprep.subr.mxu0 0.0
    %429 = vmatpush1.xpose.msra.mxu0 0.0
    %430 = vmatprep.subr.mxu0 0.0
    %431 = vmatpush1.xpose.msra.mxu0 0.0
    %432 = vmatprep.subr.mxu0 0.0
    %433 = vmatpush1.xpose.msra.mxu0 0.0
    %434 = vmatprep.subr.mxu0 0.0
    %435 = vmatpush1.xpose.msra.mxu0 0.0
    %436 = vmatprep.subr.mxu0 0.0
    %437 = vmatpush1.xpose.msra.mxu0 0.0
    %438 = vmatprep.subr.mxu0 0.0
    %439 = vmatpush1.xpose.msra.mxu0 0.0
    %440 = vmatprep.subr.mxu0 0.0
    %441 = vmatpush1.xpose.msra.mxu0 0.0
    %442 = vmatprep.subr.mxu0 0.0
    %443 = vmatpush1.xpose.msra.mxu0 0.0
    %444 = vmatprep.subr.mxu0 0.0
    %445 = vmatpush1.xpose.msra.mxu0 0.0
    %446 = vmatprep.subr.mxu0 0.0
    %447 = vmatpush1.xpose.msra.mxu0 0.0
    %448 = vmatprep.subr.mxu0 0.0
    %449 = vmatpush1.xpose.msra.mxu0 0.0
    %450 = vmatprep.subr.mxu0 0.0
    %451 = vmatpush1.xpose.msra.mxu0 0.0
    %452 = vmatprep.subr.mxu0 0.0
    %453 = vmatpush1.xpose.msra.mxu0 0.0
    %454 = vmatprep.subr.mxu0 0.0
    %455 = vmatpush1.xpose.msra.mxu0 0.0
    %456 = vmatprep.subr.mxu0 0.0
    %457 = vmatpush1.xpose.msra.mxu0 0.0
    %458 = vmatprep.subr.mxu0 0.0
    %459 = vmatpush1.xpose.msra.mxu0 0.0
    %460 = vmatprep.subr.mxu0 0.0
    %461 = vmatpush1.xpose.msra.mxu0 0.0
    %462 = vmatprep.subr.mxu0 0.0
    %463 = vmatpush1.xpose.msra.mxu0 0.0
    %464 = vmatprep.subr.mxu0 0.0
    %465 = vmatpush1.xpose.msra.mxu0 0.0
    %466 = vmatprep.mubr.f32.mxu0 0.0
    %467 = vmatmul.mubr.f32.gmra.mrb[0].mxu0 %v398
    %v468 = vpop.f32.mrb[0].mxu0
    %v469 = vadd.f32 0.0, %v468
    %v470 = vpop.f32.mrb[0].mxu0
    %471 = vdwg.mxu0
    %472 = vrot.lane.b32.xlu0 %v383, 96
    %v473 = vpop.permute.xlu0 %472
    %v474 = vsel %vm397, %v383, 0
    %v476 = vsel %vm397, %v473, 0
    %478 = vmatprep.subr.mxu0 0.0
    %479 = vmatpush1.xpose.msra.mxu0 %v476
    %480 = vmatprep.subr.mxu0 0.0
    %481 = vmatpush1.xpose.msra.mxu0 0.0
    %482 = vmatprep.subr.mxu0 0.0
    %483 = vmatpush1.xpose.msra.mxu0 0.0
    %484 = vmatprep.subr.mxu0 0.0
    %485 = vmatpush1.xpose.msra.mxu0 0.0
    %486 = vmatprep.subr.mxu0 0.0
    %487 = vmatpush1.xpose.msra.mxu0 0.0
    %488 = vmatprep.subr.mxu0 0.0
    %489 = vmatpush1.xpose.msra.mxu0 0.0
    %490 = vmatprep.subr.mxu0 0.0
    %491 = vmatpush1.xpose.msra.mxu0 0.0
    %492 = vmatprep.subr.mxu0 0.0
    %493 = vmatpush1.xpose.msra.mxu0 0.0
    %494 = vmatprep.subr.mxu0 0.0
    %495 = vmatpush1.xpose.msra.mxu0 0.0
    %496 = vmatprep.subr.mxu0 0.0
    %497 = vmatpush1.xpose.msra.mxu0 0.0
    %498 = vmatprep.subr.mxu0 0.0
    %499 = vmatpush1.xpose.msra.mxu0 0.0
    %500 = vmatprep.subr.mxu0 0.0
    %501 = vmatpush1.xpose.msra.mxu0 0.0
    %502 = vmatprep.subr.mxu0 0.0
    %503 = vmatpush1.xpose.msra.mxu0 0.0
    %504 = vmatprep.subr.mxu0 0.0
    %505 = vmatpush1.xpose.msra.mxu0 0.0
    %506 = vmatprep.subr.mxu0 0.0
    %507 = vmatpush1.xpose.msra.mxu0 0.0
    %508 = vmatprep.subr.mxu0 0.0
    %509 = vmatpush1.xpose.msra.mxu0 0.0
    %510 = vmatprep.subr.mxu0 0.0
    %511 = vmatpush1.xpose.msra.mxu0 0.0
    %512 = vmatprep.subr.mxu0 0.0
    %513 = vmatpush1.xpose.msra.mxu0 0.0
    %514 = vmatprep.subr.mxu0 0.0
    %515 = vmatpush1.xpose.msra.mxu0 0.0
    %516 = vmatprep.subr.mxu0 0.0
    %517 = vmatpush1.xpose.msra.mxu0 0.0
    %518 = vmatprep.subr.mxu0 0.0
    %519 = vmatpush1.xpose.msra.mxu0 0.0
    %520 = vmatprep.subr.mxu0 0.0
    %521 = vmatpush1.xpose.msra.mxu0 0.0
    %522 = vmatprep.subr.mxu0 0.0
    %523 = vmatpush1.xpose.msra.mxu0 0.0
    %524 = vmatprep.subr.mxu0 0.0
    %525 = vmatpush1.xpose.msra.mxu0 0.0
    %526 = vmatprep.subr.mxu0 0.0
    %527 = vmatpush1.xpose.msra.mxu0 0.0
    %528 = vmatprep.subr.mxu0 0.0
    %529 = vmatpush1.xpose.msra.mxu0 0.0
    %530 = vmatprep.subr.mxu0 0.0
    %531 = vmatpush1.xpose.msra.mxu0 0.0
    %532 = vmatprep.subr.mxu0 0.0
    %533 = vmatpush1.xpose.msra.mxu0 0.0
    %534 = vmatprep.subr.mxu0 0.0
    %535 = vmatpush1.xpose.msra.mxu0 0.0
    %536 = vmatprep.subr.mxu0 0.0
    %537 = vmatpush1.xpose.msra.mxu0 0.0
    %538 = vmatprep.subr.mxu0 0.0
    %539 = vmatpush1.xpose.msra.mxu0 0.0
    %540 = vmatprep.subr.mxu0 0.0
    %541 = vmatpush1.xpose.msra.mxu0 0.0
    %542 = vmatprep.mubr.f32.mxu0 0.0
    %543 = vmatmul.mubr.f32.gmra.mrb[0].mxu0 %v474
    %v544 = vpop.f32.mrb[0].mxu0
    %v545 = vadd.f32 0.0, %v544
    %v546 = vpop.f32.mrb[0].mxu0
    %547 = vdwg.mxu0
    %548 = vrot.lane.b32.xlu0 %v385, 96
    %v549 = vpop.permute.xlu0 %548
    %v550 = vsel %vm397, %v385, 0
    %v552 = vsel %vm397, %v549, 0
    %554 = vmatprep.subr.mxu0 0.0
    %555 = vmatpush1.xpose.msra.mxu0 %v552
    %556 = vmatprep.subr.mxu0 0.0
    %557 = vmatpush1.xpose.msra.mxu0 0.0
    %558 = vmatprep.subr.mxu0 0.0
    %559 = vmatpush1.xpose.msra.mxu0 0.0
    %560 = vmatprep.subr.mxu0 0.0
    %561 = vmatpush1.xpose.msra.mxu0 0.0
    %562 = vmatprep.subr.mxu0 0.0
    %563 = vmatpush1.xpose.msra.mxu0 0.0
    %564 = vmatprep.subr.mxu0 0.0
    %565 = vmatpush1.xpose.msra.mxu0 0.0
    %566 = vmatprep.subr.mxu0 0.0
    %567 = vmatpush1.xpose.msra.mxu0 0.0
    %568 = vmatprep.subr.mxu0 0.0
    %569 = vmatpush1.xpose.msra.mxu0 0.0
    %570 = vmatprep.subr.mxu0 0.0
    %571 = vmatpush1.xpose.msra.mxu0 0.0
    %572 = vmatprep.subr.mxu0 0.0
    %573 = vmatpush1.xpose.msra.mxu0 0.0
    %574 = vmatprep.subr.mxu0 0.0
    %575 = vmatpush1.xpose.msra.mxu0 0.0
    %576 = vmatprep.subr.mxu0 0.0
    %577 = vmatpush1.xpose.msra.mxu0 0.0
    %578 = vmatprep.subr.mxu0 0.0
    %579 = vmatpush1.xpose.msra.mxu0 0.0
    %580 = vmatprep.subr.mxu0 0.0
    %581 = vmatpush1.xpose.msra.mxu0 0.0
    %582 = vmatprep.subr.mxu0 0.0
    %583 = vmatpush1.xpose.msra.mxu0 0.0
    %584 = vmatprep.subr.mxu0 0.0
    %585 = vmatpush1.xpose.msra.mxu0 0.0
    %586 = vmatprep.subr.mxu0 0.0
    %587 = vmatpush1.xpose.msra.mxu0 0.0
    %588 = vmatprep.subr.mxu0 0.0
    %589 = vmatpush1.xpose.msra.mxu0 0.0
    %590 = vmatprep.subr.mxu0 0.0
    %591 = vmatpush1.xpose.msra.mxu0 0.0
    %592 = vmatprep.subr.mxu0 0.0
    %593 = vmatpush1.xpose.msra.mxu0 0.0
    %594 = vmatprep.subr.mxu0 0.0
    %595 = vmatpush1.xpose.msra.mxu0 0.0
    %596 = vmatprep.subr.mxu0 0.0
    %597 = vmatpush1.xpose.msra.mxu0 0.0
    %598 = vmatprep.subr.mxu0 0.0
    %599 = vmatpush1.xpose.msra.mxu0 0.0
    %600 = vmatprep.subr.mxu0 0.0
    %601 = vmatpush1.xpose.msra.mxu0 0.0
    %602 = vmatprep.subr.mxu0 0.0
    %603 = vmatpush1.xpose.msra.mxu0 0.0
    %604 = vmatprep.subr.mxu0 0.0
    %605 = vmatpush1.xpose.msra.mxu0 0.0
    %606 = vmatprep.subr.mxu0 0.0
    %607 = vmatpush1.xpose.msra.mxu0 0.0
    %608 = vmatprep.subr.mxu0 0.0
    %609 = vmatpush1.xpose.msra.mxu0 0.0
    %610 = vmatprep.subr.mxu0 0.0
    %611 = vmatpush1.xpose.msra.mxu0 0.0
    %612 = vmatprep.subr.mxu0 0.0
    %613 = vmatpush1.xpose.msra.mxu0 0.0
    %614 = vmatprep.subr.mxu0 0.0
    %615 = vmatpush1.xpose.msra.mxu0 0.0
    %616 = vmatprep.subr.mxu0 0.0
    %617 = vmatpush1.xpose.msra.mxu0 0.0
    %618 = vmatprep.mubr.f32.mxu0 0.0
    %619 = vmatmul.mubr.f32.gmra.mrb[0].mxu0 %v550
    %v620 = vpop.f32.mrb[0].mxu0
    %v621 = vadd.f32 0.0, %v620
    %v622 = vpop.f32.mrb[0].mxu0
    %623 = vdwg.mxu0
    %624 = vrot.lane.b32.xlu0 %v387, 96
    %v625 = vpop.permute.xlu0 %624
    %v626 = vsel %vm397, %v387, 0
    %v628 = vsel %vm397, %v625, 0
    %630 = vmatprep.subr.mxu0 0.0
    %631 = vmatpush1.xpose.msra.mxu0 %v628
    %632 = vmatprep.subr.mxu0 0.0
    %633 = vmatpush1.xpose.msra.mxu0 0.0
    %634 = vmatprep.subr.mxu0 0.0
    %635 = vmatpush1.xpose.msra.mxu0 0.0
    %636 = vmatprep.subr.mxu0 0.0
    %637 = vmatpush1.xpose.msra.mxu0 0.0
    %638 = vmatprep.subr.mxu0 0.0
    %639 = vmatpush1.xpose.msra.mxu0 0.0
    %640 = vmatprep.subr.mxu0 0.0
    %641 = vmatpush1.xpose.msra.mxu0 0.0
    %642 = vmatprep.subr.mxu0 0.0
    %643 = vmatpush1.xpose.msra.mxu0 0.0
    %644 = vmatprep.subr.mxu0 0.0
    %645 = vmatpush1.xpose.msra.mxu0 0.0
    %646 = vmatprep.subr.mxu0 0.0
    %647 = vmatpush1.xpose.msra.mxu0 0.0
    %648 = vmatprep.subr.mxu0 0.0
    %649 = vmatpush1.xpose.msra.mxu0 0.0
    %650 = vmatprep.subr.mxu0 0.0
    %651 = vmatpush1.xpose.msra.mxu0 0.0
    %652 = vmatprep.subr.mxu0 0.0
    %653 = vmatpush1.xpose.msra.mxu0 0.0
    %654 = vmatprep.subr.mxu0 0.0
    %655 = vmatpush1.xpose.msra.mxu0 0.0
    %656 = vmatprep.subr.mxu0 0.0
    %657 = vmatpush1.xpose.msra.mxu0 0.0
    %658 = vmatprep.subr.mxu0 0.0
    %659 = vmatpush1.xpose.msra.mxu0 0.0
    %660 = vmatprep.subr.mxu0 0.0
    %661 = vmatpush1.xpose.msra.mxu0 0.0
    %662 = vmatprep.subr.mxu0 0.0
    %663 = vmatpush1.xpose.msra.mxu0 0.0
    %664 = vmatprep.subr.mxu0 0.0
    %665 = vmatpush1.xpose.msra.mxu0 0.0
    %666 = vmatprep.subr.mxu0 0.0
    %667 = vmatpush1.xpose.msra.mxu0 0.0
    %668 = vmatprep.subr.mxu0 0.0
    %669 = vmatpush1.xpose.msra.mxu0 0.0
    %670 = vmatprep.subr.mxu0 0.0
    %671 = vmatpush1.xpose.msra.mxu0 0.0
    %672 = vmatprep.subr.mxu0 0.0
    %673 = vmatpush1.xpose.msra.mxu0 0.0
    %674 = vmatprep.subr.mxu0 0.0
    %675 = vmatpush1.xpose.msra.mxu0 0.0
    %676 = vmatprep.subr.mxu0 0.0
    %677 = vmatpush1.xpose.msra.mxu0 0.0
    %678 = vmatprep.subr.mxu0 0.0
    %679 = vmatpush1.xpose.msra.mxu0 0.0
    %680 = vmatprep.subr.mxu0 0.0
    %681 = vmatpush1.xpose.msra.mxu0 0.0
    %682 = vmatprep.subr.mxu0 0.0
    %683 = vmatpush1.xpose.msra.mxu0 0.0
    %684 = vmatprep.subr.mxu0 0.0
    %685 = vmatpush1.xpose.msra.mxu0 0.0
    %686 = vmatprep.subr.mxu0 0.0
    %687 = vmatpush1.xpose.msra.mxu0 0.0
    %688 = vmatprep.subr.mxu0 0.0
    %689 = vmatpush1.xpose.msra.mxu0 0.0
    %690 = vmatprep.subr.mxu0 0.0
    %691 = vmatpush1.xpose.msra.mxu0 0.0
    %692 = vmatprep.subr.mxu0 0.0
    %693 = vmatpush1.xpose.msra.mxu0 0.0
    %694 = vmatprep.mubr.f32.mxu0 0.0
    %695 = vmatmul.mubr.f32.gmra.mrb[0].mxu0 %v626
    %v696 = vpop.f32.mrb[0].mxu0
    %v697 = vadd.f32 0.0, %v696
    %v698 = vpop.f32.mrb[0].mxu0
    %699 = vdwg.mxu0
    %700 = vrot.lane.b32.xlu0 %v378, 96
    %v701 = vpop.permute.xlu0 %700
    %v702 = vsel %vm397, %v378, 0
    %v704 = vsel %vm397, %v701, 0
    %706 = vmatprep.subr.mxu0 0.0
    %707 = vmatpush1.xpose.msra.mxu0 %v704
    %708 = vmatprep.subr.mxu0 0.0
    %709 = vmatpush1.xpose.msra.mxu0 0.0
    %710 = vmatprep.subr.mxu0 0.0
    %711 = vmatpush1.xpose.msra.mxu0 0.0
    %712 = vmatprep.subr.mxu0 0.0
    %713 = vmatpush1.xpose.msra.mxu0 0.0
    %714 = vmatprep.subr.mxu0 0.0
    %715 = vmatpush1.xpose.msra.mxu0 0.0
    %716 = vmatprep.subr.mxu0 0.0
    %717 = vmatpush1.xpose.msra.mxu0 0.0
    %718 = vmatprep.subr.mxu0 0.0
    %719 = vmatpush1.xpose.msra.mxu0 0.0
    %720 = vmatprep.subr.mxu0 0.0
    %721 = vmatpush1.xpose.msra.mxu0 0.0
    %722 = vmatprep.subr.mxu0 0.0
    %723 = vmatpush1.xpose.msra.mxu0 0.0
    %724 = vmatprep.subr.mxu0 0.0
    %725 = vmatpush1.xpose.msra.mxu0 0.0
    %726 = vmatprep.subr.mxu0 0.0
    %727 = vmatpush1.xpose.msra.mxu0 0.0
    %728 = vmatprep.subr.mxu0 0.0
    %729 = vmatpush1.xpose.msra.mxu0 0.0
    %730 = vmatprep.subr.mxu0 0.0
    %731 = vmatpush1.xpose.msra.mxu0 0.0
    %732 = vmatprep.subr.mxu0 0.0
    %733 = vmatpush1.xpose.msra.mxu0 0.0
    %734 = vmatprep.subr.mxu0 0.0
    %735 = vmatpush1.xpose.msra.mxu0 0.0
    %736 = vmatprep.subr.mxu0 0.0
    %737 = vmatpush1.xpose.msra.mxu0 0.0
    %738 = vmatprep.subr.mxu0 0.0
    %739 = vmatpush1.xpose.msra.mxu0 0.0
    %740 = vmatprep.subr.mxu0 0.0
    %741 = vmatpush1.xpose.msra.mxu0 0.0
    %742 = vmatprep.subr.mxu0 0.0
    %743 = vmatpush1.xpose.msra.mxu0 0.0
    %744 = vmatprep.subr.mxu0 0.0
    %745 = vmatpush1.xpose.msra.mxu0 0.0
    %746 = vmatprep.subr.mxu0 0.0
    %747 = vmatpush1.xpose.msra.mxu0 0.0
    %748 = vmatprep.subr.mxu0 0.0
    %749 = vmatpush1.xpose.msra.mxu0 0.0
    %750 = vmatprep.subr.mxu0 0.0
    %751 = vmatpush1.xpose.msra.mxu0 0.0
    %752 = vmatprep.subr.mxu0 0.0
    %753 = vmatpush1.xpose.msra.mxu0 0.0
    %754 = vmatprep.subr.mxu0 0.0
    %755 = vmatpush1.xpose.msra.mxu0 0.0
    %756 = vmatprep.subr.mxu0 0.0
    %757 = vmatpush1.xpose.msra.mxu0 0.0
    %758 = vmatprep.subr.mxu0 0.0
    %759 = vmatpush1.xpose.msra.mxu0 0.0
    %760 = vmatprep.subr.mxu0 0.0
    %761 = vmatpush1.xpose.msra.mxu0 0.0
    %762 = vmatprep.subr.mxu0 0.0
    %763 = vmatpush1.xpose.msra.mxu0 0.0
    %764 = vmatprep.subr.mxu0 0.0
    %765 = vmatpush1.xpose.msra.mxu0 0.0
    %766 = vmatprep.subr.mxu0 0.0
    %767 = vmatpush1.xpose.msra.mxu0 0.0
    %768 = vmatprep.subr.mxu0 0.0
    %769 = vmatpush1.xpose.msra.mxu0 0.0
    %770 = vmatprep.mubr.f32.mxu0 0.0
    %771 = vmatmul.mubr.f32.gmra.mrb[0].mxu0 %v702
    %v772 = vpop.f32.mrb[0].mxu0
    %v773 = vadd.f32 0.0, %v772
    %v774 = vpop.f32.mrb[0].mxu0
    %775 = vdwg.mxu0
    %776 = vrot.lane.b32.xlu0 %v390, 96
    %v777 = vpop.permute.xlu0 %776
    %v778 = vsel %vm397, %v390, 0
    %v780 = vsel %vm397, %v777, 0
    %782 = vmatprep.subr.mxu0 0.0
    %783 = vmatpush1.xpose.msra.mxu0 %v780
    %784 = vmatprep.subr.mxu0 0.0
    %785 = vmatpush1.xpose.msra.mxu0 0.0
    %786 = vmatprep.subr.mxu0 0.0
    %787 = vmatpush1.xpose.msra.mxu0 0.0
    %788 = vmatprep.subr.mxu0 0.0
    %789 = vmatpush1.xpose.msra.mxu0 0.0
    %790 = vmatprep.subr.mxu0 0.0
    %791 = vmatpush1.xpose.msra.mxu0 0.0
    %792 = vmatprep.subr.mxu0 0.0
    %793 = vmatpush1.xpose.msra.mxu0 0.0
    %794 = vmatprep.subr.mxu0 0.0
    %795 = vmatpush1.xpose.msra.mxu0 0.0
    %796 = vmatprep.subr.mxu0 0.0
    %797 = vmatpush1.xpose.msra.mxu0 0.0
    %798 = vmatprep.subr.mxu0 0.0
    %799 = vmatpush1.xpose.msra.mxu0 0.0
    %800 = vmatprep.subr.mxu0 0.0
    %801 = vmatpush1.xpose.msra.mxu0 0.0
    %802 = vmatprep.subr.mxu0 0.0
    %803 = vmatpush1.xpose.msra.mxu0 0.0
    %804 = vmatprep.subr.mxu0 0.0
    %805 = vmatpush1.xpose.msra.mxu0 0.0
    %806 = vmatprep.subr.mxu0 0.0
    %807 = vmatpush1.xpose.msra.mxu0 0.0
    %808 = vmatprep.subr.mxu0 0.0
    %809 = vmatpush1.xpose.msra.mxu0 0.0
    %810 = vmatprep.subr.mxu0 0.0
    %811 = vmatpush1.xpose.msra.mxu0 0.0
    %812 = vmatprep.subr.mxu0 0.0
    %813 = vmatpush1.xpose.msra.mxu0 0.0
    %814 = vmatprep.subr.mxu0 0.0
    %815 = vmatpush1.xpose.msra.mxu0 0.0
    %816 = vmatprep.subr.mxu0 0.0
    %817 = vmatpush1.xpose.msra.mxu0 0.0
    %818 = vmatprep.subr.mxu0 0.0
    %819 = vmatpush1.xpose.msra.mxu0 0.0
    %820 = vmatprep.subr.mxu0 0.0
    %821 = vmatpush1.xpose.msra.mxu0 0.0
    %822 = vmatprep.subr.mxu0 0.0
    %823 = vmatpush1.xpose.msra.mxu0 0.0
    %824 = vmatprep.subr.mxu0 0.0
    %825 = vmatpush1.xpose.msra.mxu0 0.0
    %826 = vmatprep.subr.mxu0 0.0
    %827 = vmatpush1.xpose.msra.mxu0 0.0
    %828 = vmatprep.subr.mxu0 0.0
    %829 = vmatpush1.xpose.msra.mxu0 0.0
    %830 = vmatprep.subr.mxu0 0.0
    %831 = vmatpush1.xpose.msra.mxu0 0.0
    %832 = vmatprep.subr.mxu0 0.0
    %833 = vmatpush1.xpose.msra.mxu0 0.0
    %834 = vmatprep.subr.mxu0 0.0
    %835 = vmatpush1.xpose.msra.mxu0 0.0
    %836 = vmatprep.subr.mxu0 0.0
    %837 = vmatpush1.xpose.msra.mxu0 0.0
    %838 = vmatprep.subr.mxu0 0.0
    %839 = vmatpush1.xpose.msra.mxu0 0.0
    %840 = vmatprep.subr.mxu0 0.0
    %841 = vmatpush1.xpose.msra.mxu0 0.0
    %842 = vmatprep.subr.mxu0 0.0
    %843 = vmatpush1.xpose.msra.mxu0 0.0
    %844 = vmatprep.subr.mxu0 0.0
    %845 = vmatpush1.xpose.msra.mxu0 0.0
    %846 = vmatprep.mubr.f32.mxu0 0.0
    %847 = vmatmul.mubr.f32.gmra.mrb[0].mxu0 %v778
    %v848 = vpop.f32.mrb[0].mxu0
    %v849 = vadd.f32 0.0, %v848
    %v850 = vpop.f32.mrb[0].mxu0
    %851 = vdwg.mxu0
    %852 = vrot.lane.b32.xlu0 %v392, 96
    %v853 = vpop.permute.xlu0 %852
    %v854 = vsel %vm397, %v392, 0
    %v856 = vsel %vm397, %v853, 0
    %858 = vmatprep.subr.mxu0 0.0
    %859 = vmatpush1.xpose.msra.mxu0 %v856
    %860 = vmatprep.subr.mxu0 0.0
    %861 = vmatpush1.xpose.msra.mxu0 0.0
    %862 = vmatprep.subr.mxu0 0.0
    %863 = vmatpush1.xpose.msra.mxu0 0.0
    %864 = vmatprep.subr.mxu0 0.0
    %865 = vmatpush1.xpose.msra.mxu0 0.0
    %866 = vmatprep.subr.mxu0 0.0
    %867 = vmatpush1.xpose.msra.mxu0 0.0
    %868 = vmatprep.subr.mxu0 0.0
    %869 = vmatpush1.xpose.msra.mxu0 0.0
    %870 = vmatprep.subr.mxu0 0.0
    %871 = vmatpush1.xpose.msra.mxu0 0.0
    %872 = vmatprep.subr.mxu0 0.0
    %873 = vmatpush1.xpose.msra.mxu0 0.0
    %874 = vmatprep.subr.mxu0 0.0
    %875 = vmatpush1.xpose.msra.mxu0 0.0
    %876 = vmatprep.subr.mxu0 0.0
    %877 = vmatpush1.xpose.msra.mxu0 0.0
    %878 = vmatprep.subr.mxu0 0.0
    %879 = vmatpush1.xpose.msra.mxu0 0.0
    %880 = vmatprep.subr.mxu0 0.0
    %881 = vmatpush1.xpose.msra.mxu0 0.0
    %882 = vmatprep.subr.mxu0 0.0
    %883 = vmatpush1.xpose.msra.mxu0 0.0
    %884 = vmatprep.subr.mxu0 0.0
    %885 = vmatpush1.xpose.msra.mxu0 0.0
    %886 = vmatprep.subr.mxu0 0.0
    %887 = vmatpush1.xpose.msra.mxu0 0.0
    %888 = vmatprep.subr.mxu0 0.0
    %889 = vmatpush1.xpose.msra.mxu0 0.0
    %890 = vmatprep.subr.mxu0 0.0
    %891 = vmatpush1.xpose.msra.mxu0 0.0
    %892 = vmatprep.subr.mxu0 0.0
    %893 = vmatpush1.xpose.msra.mxu0 0.0
    %894 = vmatprep.subr.mxu0 0.0
    %895 = vmatpush1.xpose.msra.mxu0 0.0
    %896 = vmatprep.subr.mxu0 0.0
    %897 = vmatpush1.xpose.msra.mxu0 0.0
    %898 = vmatprep.subr.mxu0 0.0
    %899 = vmatpush1.xpose.msra.mxu0 0.0
    %900 = vmatprep.subr.mxu0 0.0
    %901 = vmatpush1.xpose.msra.mxu0 0.0
    %902 = vmatprep.subr.mxu0 0.0
    %903 = vmatpush1.xpose.msra.mxu0 0.0
    %904 = vmatprep.subr.mxu0 0.0
    %905 = vmatpush1.xpose.msra.mxu0 0.0
    %906 = vmatprep.subr.mxu0 0.0
    %907 = vmatpush1.xpose.msra.mxu0 0.0
    %908 = vmatprep.subr.mxu0 0.0
    %909 = vmatpush1.xpose.msra.mxu0 0.0
    %910 = vmatprep.subr.mxu0 0.0
    %911 = vmatpush1.xpose.msra.mxu0 0.0
    %912 = vmatprep.subr.mxu0 0.0
    %913 = vmatpush1.xpose.msra.mxu0 0.0
    %914 = vmatprep.subr.mxu0 0.0
    %915 = vmatpush1.xpose.msra.mxu0 0.0
    %916 = vmatprep.subr.mxu0 0.0
    %917 = vmatpush1.xpose.msra.mxu0 0.0
    %918 = vmatprep.subr.mxu0 0.0
    %919 = vmatpush1.xpose.msra.mxu0 0.0
    %920 = vmatprep.subr.mxu0 0.0
    %921 = vmatpush1.xpose.msra.mxu0 0.0
    %922 = vmatprep.mubr.f32.mxu0 0.0
    %923 = vmatmul.mubr.f32.gmra.mrb[0].mxu0 %v854
    %v924 = vpop.f32.mrb[0].mxu0
    %v925 = vadd.f32 0.0, %v924
    %v926 = vpop.f32.mrb[0].mxu0
    %927 = vdwg.mxu0
    %928 = vrot.lane.b32.xlu0 %v394, 96
    %v929 = vpop.permute.xlu0 %928
    %v930 = vsel %vm397, %v394, 0
    %v932 = vsel %vm397, %v929, 0
    %934 = vmatprep.subr.mxu0 0.0
    %935 = vmatpush1.xpose.msra.mxu0 %v932
    %936 = vmatprep.subr.mxu0 0.0
    %937 = vmatpush1.xpose.msra.mxu0 0.0
    %938 = vmatprep.subr.mxu0 0.0
    %939 = vmatpush1.xpose.msra.mxu0 0.0
    %940 = vmatprep.subr.mxu0 0.0
    %941 = vmatpush1.xpose.msra.mxu0 0.0
    %942 = vmatprep.subr.mxu0 0.0
    %943 = vmatpush1.xpose.msra.mxu0 0.0
    %944 = vmatprep.subr.mxu0 0.0
    %945 = vmatpush1.xpose.msra.mxu0 0.0
    %946 = vmatprep.subr.mxu0 0.0
    %947 = vmatpush1.xpose.msra.mxu0 0.0
    %948 = vmatprep.subr.mxu0 0.0
    %949 = vmatpush1.xpose.msra.mxu0 0.0
    %950 = vmatprep.subr.mxu0 0.0
    %951 = vmatpush1.xpose.msra.mxu0 0.0
    %952 = vmatprep.subr.mxu0 0.0
    %953 = vmatpush1.xpose.msra.mxu0 0.0
    %954 = vmatprep.subr.mxu0 0.0
    %955 = vmatpush1.xpose.msra.mxu0 0.0
    %956 = vmatprep.subr.mxu0 0.0
    %957 = vmatpush1.xpose.msra.mxu0 0.0
    %958 = vmatprep.subr.mxu0 0.0
    %959 = vmatpush1.xpose.msra.mxu0 0.0
    %960 = vmatprep.subr.mxu0 0.0
    %961 = vmatpush1.xpose.msra.mxu0 0.0
    %962 = vmatprep.subr.mxu0 0.0
    %963 = vmatpush1.xpose.msra.mxu0 0.0
    %964 = vmatprep.subr.mxu0 0.0
    %965 = vmatpush1.xpose.msra.mxu0 0.0
    %966 = vmatprep.subr.mxu0 0.0
    %967 = vmatpush1.xpose.msra.mxu0 0.0
    %968 = vmatprep.subr.mxu0 0.0
    %969 = vmatpush1.xpose.msra.mxu0 0.0
    %970 = vmatprep.subr.mxu0 0.0
    %971 = vmatpush1.xpose.msra.mxu0 0.0
    %972 = vmatprep.subr.mxu0 0.0
    %973 = vmatpush1.xpose.msra.mxu0 0.0
    %974 = vmatprep.subr.mxu0 0.0
    %975 = vmatpush1.xpose.msra.mxu0 0.0
    %976 = vmatprep.subr.mxu0 0.0
    %977 = vmatpush1.xpose.msra.mxu0 0.0
    %978 = vmatprep.subr.mxu0 0.0
    %979 = vmatpush1.xpose.msra.mxu0 0.0
    %980 = vmatprep.subr.mxu0 0.0
    %981 = vmatpush1.xpose.msra.mxu0 0.0
    %982 = vmatprep.subr.mxu0 0.0
    %983 = vmatpush1.xpose.msra.mxu0 0.0
    %984 = vmatprep.subr.mxu0 0.0
    %985 = vmatpush1.xpose.msra.mxu0 0.0
    %986 = vmatprep.subr.mxu0 0.0
    %987 = vmatpush1.xpose.msra.mxu0 0.0
    %988 = vmatprep.subr.mxu0 0.0
    %989 = vmatpush1.xpose.msra.mxu0 0.0
    %990 = vmatprep.subr.mxu0 0.0
    %991 = vmatpush1.xpose.msra.mxu0 0.0
    %992 = vmatprep.subr.mxu0 0.0
    %993 = vmatpush1.xpose.msra.mxu0 0.0
    %994 = vmatprep.subr.mxu0 0.0
    %995 = vmatpush1.xpose.msra.mxu0 0.0
    %996 = vmatprep.subr.mxu0 0.0
    %997 = vmatpush1.xpose.msra.mxu0 0.0
    %998 = vmatprep.mubr.f32.mxu0 0.0
    %999 = vmatmul.mubr.f32.gmra.mrb[0].mxu0 %v930
    %v1000 = vpop.f32.mrb[0].mxu0
    %v1001 = vadd.f32 0.0, %v1000
    %v1002 = vpop.f32.mrb[0].mxu0
    %1003 = vdwg.mxu0
    %v1004 = vmul.f32 %v469, 0.35355338
    %v1005 = vmul.f32 %v545, 0.35355338
    %v1006 = vmul.f32 %v621, 0.35355338
    %v1007 = vmul.f32 %v697, 0.35355338
    %v1008 = vmul.f32 %v773, 0.35355338
    %v1009 = vmul.f32 %v849, 0.35355338
    %v1010 = vmul.f32 %v925, 0.35355338
    %v1011 = vmul.f32 %v1001, 0.35355338
    %v1012 = vsel %vm397, %v1004, -inf
    %1013 = vmax.xlane.f32.xlu0 %v1012
    %v1014 = vpop.xlane.xlu0 %1013
    %v1015 = vsel %vm397, %v1005, -inf
    %1016 = vmax.xlane.f32.xlu0 %v1015
    %v1017 = vpop.xlane.xlu0 %1016
    %v1018 = vsel %vm397, %v1006, -inf
    %1019 = vmax.xlane.f32.xlu0 %v1018
    %v1020 = vpop.xlane.xlu0 %1019
    %v1021 = vsel %vm397, %v1007, -inf
    %1022 = vmax.xlane.f32.xlu0 %v1021
    %v1023 = vpop.xlane.xlu0 %1022
    %v1024 = vsel %vm397, %v1008, -inf
    %1025 = vmax.xlane.f32.xlu0 %v1024
    %v1026 = vpop.xlane.xlu0 %1025
    %v1027 = vsel %vm397, %v1009, -inf
    %1028 = vmax.xlane.f32.xlu0 %v1027
    %v1029 = vpop.xlane.xlu0 %1028
    %v1030 = vsel %vm397, %v1010, -inf
    %1031 = vmax.xlane.f32.xlu0 %v1030
    %v1032 = vpop.xlane.xlu0 %1031
    %v1033 = vsel %vm397, %v1011, -inf
    %1034 = vmax.xlane.f32.xlu0 %v1033
    %v1035 = vpop.xlane.xlu0 %1034
    %v1036 = vsub.f32 %v1004, %v1014
    %v1037 = vsub.f32 %v1005, %v1017
    %v1038 = vsub.f32 %v1006, %v1020
    %v1039 = vsub.f32 %v1007, %v1023
    %v1040 = vsub.f32 %v1008, %v1026
    %v1041 = vsub.f32 %v1009, %v1029
    %v1042 = vsub.f32 %v1010, %v1032
    %v1043 = vsub.f32 %v1011, %v1035
    %v1044 = vmul.f32 %v1036, 1.442695
    %v1045 = vpow.pop %v1044
    %v1046 = vmul.f32 %v1037, 1.442695
    %v1047 = vpow.pop %v1046
    %v1048 = vmul.f32 %v1038, 1.442695
    %v1049 = vpow.pop %v1048
    %v1050 = vmul.f32 %v1039, 1.442695
    %v1051 = vpow.pop %v1050
    %v1052 = vmul.f32 %v1040, 1.442695
    %v1053 = vpow.pop %v1052
    %v1054 = vmul.f32 %v1041, 1.442695
    %v1055 = vpow.pop %v1054
    %v1056 = vmul.f32 %v1042, 1.442695
    %v1057 = vpow.pop %v1056
    %v1058 = vmul.f32 %v1043, 1.442695
    %v1059 = vpow.pop %v1058
    %v1060 = vsel %vm397, %v1045, 0.0
    %1061 = vadd.xlane.f32.xlu0 %v1060
    %v1062 = vpop.xlane.xlu0 %1061
    %v1063 = vsel %vm397, %v1047, 0.0
    %1064 = vadd.xlane.f32.xlu0 %v1063
    %v1065 = vpop.xlane.xlu0 %1064
    %v1066 = vsel %vm397, %v1049, 0.0
    %1067 = vadd.xlane.f32.xlu0 %v1066
    %v1068 = vpop.xlane.xlu0 %1067
    %v1069 = vsel %vm397, %v1051, 0.0
    %1070 = vadd.xlane.f32.xlu0 %v1069
    %v1071 = vpop.xlane.xlu0 %1070
    %v1072 = vsel %vm397, %v1053, 0.0
    %1073 = vadd.xlane.f32.xlu0 %v1072
    %v1074 = vpop.xlane.xlu0 %1073
    %v1075 = vsel %vm397, %v1055, 0.0
    %1076 = vadd.xlane.f32.xlu0 %v1075
    %v1077 = vpop.xlane.xlu0 %1076
    %v1078 = vsel %vm397, %v1057, 0.0
    %1079 = vadd.xlane.f32.xlu0 %v1078
    %v1080 = vpop.xlane.xlu0 %1079
    %v1081 = vsel %vm397, %v1059, 0.0
    %1082 = vadd.xlane.f32.xlu0 %v1081
    %v1083 = vpop.xlane.xlu0 %1082
    %v1084 = vrcp.pop %v1062
    %v1085 = vmul.f32 %v1045, %v1084
    %v1086 = vrcp.pop %v1065
    %v1087 = vmul.f32 %v1047, %v1086
    %v1088 = vrcp.pop %v1068
    %v1089 = vmul.f32 %v1049, %v1088
    %v1090 = vrcp.pop %v1071
    %v1091 = vmul.f32 %v1051, %v1090
    %v1092 = vrcp.pop %v1074
    %v1093 = vmul.f32 %v1053, %v1092
    %v1094 = vrcp.pop %v1077
    %v1095 = vmul.f32 %v1055, %v1094
    %v1096 = vrcp.pop %v1080
    %v1097 = vmul.f32 %v1057, %v1096
    %v1098 = vrcp.pop %v1083
    %v1099 = vmul.f32 %v1059, %v1098
    %1101 = vrot.lane.b32.xlu0 %v1087, 8
    %v1102 = vpop.permute.xlu0 %1101
    %1105 = vrot.lane.b32.xlu0 %v1089, 16
    %v1106 = vpop.permute.xlu0 %1105
    %1109 = vrot.lane.b32.xlu0 %v1091, 24
    %v1110 = vpop.permute.xlu0 %1109
    %v1112 = vsel %vm397, %v1085, %v1102
    %vm1113 = vcmask 130048
    %v1114 = vsel %vm1113, %v1112, %v1106
    %vm1115 = vcmask 195584
    %v1116 = vsel %vm1115, %v1114, %v1110
    %1118 = vrot.lane.b32.xlu0 %v1095, 8
    %v1119 = vpop.permute.xlu0 %1118
    %1122 = vrot.lane.b32.xlu0 %v1097, 16
    %v1123 = vpop.permute.xlu0 %1122
    %1126 = vrot.lane.b32.xlu0 %v1099, 24
    %v1127 = vpop.permute.xlu0 %1126
    %v1129 = vsel %vm397, %v1093, %v1119
    %v1130 = vsel %vm1113, %v1129, %v1123
    %v1131 = vsel %vm1115, %v1130, %v1127
    %1132 = vst.msk [vmem:[%s22] sm:$0xff] %vm158, %v1116
    %1133 = vst.msk [vmem:[%s22 + $0x8] sm:$0xff] %vm158, %v1131
    %1134 = vrot.lane.b32.xlu0 %v373, 64
    %v1135 = vpop.permute.xlu0 %1134
    %v1138 = vsel %vm397, %v1085, 0
    %1140 = vmatprep.subr.mxu0 0.0
    %1141 = vmatpush1.msra.mxu0 %v1135
    %1142 = vmatprep.subr.mxu0 0.0
    %1143 = vmatpush1.msra.mxu0 0.0
    %1144 = vmatprep.subr.mxu0 0.0
    %1145 = vmatpush1.msra.mxu0 0.0
    %1146 = vmatprep.subr.mxu0 0.0
    %1147 = vmatpush1.msra.mxu0 0.0
    %1148 = vmatprep.subr.mxu0 0.0
    %1149 = vmatpush1.msra.mxu0 0.0
    %1150 = vmatprep.subr.mxu0 0.0
    %1151 = vmatpush1.msra.mxu0 0.0
    %1152 = vmatprep.subr.mxu0 0.0
    %1153 = vmatpush1.msra.mxu0 0.0
    %1154 = vmatprep.subr.mxu0 0.0
    %1155 = vmatpush1.msra.mxu0 0.0
    %1156 = vmatprep.subr.mxu0 0.0
    %1157 = vmatpush1.msra.mxu0 0.0
    %1158 = vmatprep.subr.mxu0 0.0
    %1159 = vmatpush1.msra.mxu0 0.0
    %1160 = vmatprep.subr.mxu0 0.0
    %1161 = vmatpush1.msra.mxu0 0.0
    %1162 = vmatprep.subr.mxu0 0.0
    %1163 = vmatpush1.msra.mxu0 0.0
    %1164 = vmatprep.subr.mxu0 0.0
    %1165 = vmatpush1.msra.mxu0 0.0
    %1166 = vmatprep.subr.mxu0 0.0
    %1167 = vmatpush1.msra.mxu0 0.0
    %1168 = vmatprep.subr.mxu0 0.0
    %1169 = vmatpush1.msra.mxu0 0.0
    %1170 = vmatprep.subr.mxu0 0.0
    %1171 = vmatpush1.msra.mxu0 0.0
    %1172 = vmatprep.subr.mxu0 0.0
    %1173 = vmatpush1.msra.mxu0 0.0
    %1174 = vmatprep.subr.mxu0 0.0
    %1175 = vmatpush1.msra.mxu0 0.0
    %1176 = vmatprep.subr.mxu0 0.0
    %1177 = vmatpush1.msra.mxu0 0.0
    %1178 = vmatprep.subr.mxu0 0.0
    %1179 = vmatpush1.msra.mxu0 0.0
    %1180 = vmatprep.subr.mxu0 0.0
    %1181 = vmatpush1.msra.mxu0 0.0
    %1182 = vmatprep.subr.mxu0 0.0
    %1183 = vmatpush1.msra.mxu0 0.0
    %1184 = vmatprep.subr.mxu0 0.0
    %1185 = vmatpush1.msra.mxu0 0.0
    %1186 = vmatprep.subr.mxu0 0.0
    %1187 = vmatpush1.msra.mxu0 0.0
    %1188 = vmatprep.subr.mxu0 0.0
    %1189 = vmatpush1.msra.mxu0 0.0
    %1190 = vmatprep.subr.mxu0 0.0
    %1191 = vmatpush1.msra.mxu0 0.0
    %1192 = vmatprep.subr.mxu0 0.0
    %1193 = vmatpush1.msra.mxu0 0.0
    %1194 = vmatprep.subr.mxu0 0.0
    %1195 = vmatpush1.msra.mxu0 0.0
    %1196 = vmatprep.subr.mxu0 0.0
    %1197 = vmatpush1.msra.mxu0 0.0
    %1198 = vmatprep.subr.mxu0 0.0
    %1199 = vmatpush1.msra.mxu0 0.0
    %1200 = vmatprep.subr.mxu0 0.0
    %1201 = vmatpush1.msra.mxu0 0.0
    %1202 = vmatprep.subr.mxu0 0.0
    %1203 = vmatpush1.msra.mxu0 0.0
    %1204 = vmatprep.mubr.f32.mxu0 0.0
    %1205 = vmatmul.mubr.f32.gmra.mrb[0].mxu0 %v1138
    %v1206 = vpop.f32.mrb[0].mxu0
    %v1207 = vadd.f32 0.0, %v1206
    %v1208 = vpop.f32.mrb[0].mxu0
    %1209 = vdwg.mxu0
    %1210 = vrot.lane.b32.xlu0 %v383, 64
    %v1211 = vpop.permute.xlu0 %1210
    %v1213 = vsel %vm397, %v1087, 0
    %1215 = vmatprep.subr.mxu0 0.0
    %1216 = vmatpush1.msra.mxu0 %v1211
    %1217 = vmatprep.subr.mxu0 0.0
    %1218 = vmatpush1.msra.mxu0 0.0
    %1219 = vmatprep.subr.mxu0 0.0
    %1220 = vmatpush1.msra.mxu0 0.0
    %1221 = vmatprep.subr.mxu0 0.0
    %1222 = vmatpush1.msra.mxu0 0.0
    %1223 = vmatprep.subr.mxu0 0.0
    %1224 = vmatpush1.msra.mxu0 0.0
    %1225 = vmatprep.subr.mxu0 0.0
    %1226 = vmatpush1.msra.mxu0 0.0
    %1227 = vmatprep.subr.mxu0 0.0
    %1228 = vmatpush1.msra.mxu0 0.0
    %1229 = vmatprep.subr.mxu0 0.0
    %1230 = vmatpush1.msra.mxu0 0.0
    %1231 = vmatprep.subr.mxu0 0.0
    %1232 = vmatpush1.msra.mxu0 0.0
    %1233 = vmatprep.subr.mxu0 0.0
    %1234 = vmatpush1.msra.mxu0 0.0
    %1235 = vmatprep.subr.mxu0 0.0
    %1236 = vmatpush1.msra.mxu0 0.0
    %1237 = vmatprep.subr.mxu0 0.0
    %1238 = vmatpush1.msra.mxu0 0.0
    %1239 = vmatprep.subr.mxu0 0.0
    %1240 = vmatpush1.msra.mxu0 0.0
    %1241 = vmatprep.subr.mxu0 0.0
    %1242 = vmatpush1.msra.mxu0 0.0
    %1243 = vmatprep.subr.mxu0 0.0
    %1244 = vmatpush1.msra.mxu0 0.0
    %1245 = vmatprep.subr.mxu0 0.0
    %1246 = vmatpush1.msra.mxu0 0.0
    %1247 = vmatprep.subr.mxu0 0.0
    %1248 = vmatpush1.msra.mxu0 0.0
    %1249 = vmatprep.subr.mxu0 0.0
    %1250 = vmatpush1.msra.mxu0 0.0
    %1251 = vmatprep.subr.mxu0 0.0
    %1252 = vmatpush1.msra.mxu0 0.0
    %1253 = vmatprep.subr.mxu0 0.0
    %1254 = vmatpush1.msra.mxu0 0.0
    %1255 = vmatprep.subr.mxu0 0.0
    %1256 = vmatpush1.msra.mxu0 0.0
    %1257 = vmatprep.subr.mxu0 0.0
    %1258 = vmatpush1.msra.mxu0 0.0
    %1259 = vmatprep.subr.mxu0 0.0
    %1260 = vmatpush1.msra.mxu0 0.0
    %1261 = vmatprep.subr.mxu0 0.0
    %1262 = vmatpush1.msra.mxu0 0.0
    %1263 = vmatprep.subr.mxu0 0.0
    %1264 = vmatpush1.msra.mxu0 0.0
    %1265 = vmatprep.subr.mxu0 0.0
    %1266 = vmatpush1.msra.mxu0 0.0
    %1267 = vmatprep.subr.mxu0 0.0
    %1268 = vmatpush1.msra.mxu0 0.0
    %1269 = vmatprep.subr.mxu0 0.0
    %1270 = vmatpush1.msra.mxu0 0.0
    %1271 = vmatprep.subr.mxu0 0.0
    %1272 = vmatpush1.msra.mxu0 0.0
    %1273 = vmatprep.subr.mxu0 0.0
    %1274 = vmatpush1.msra.mxu0 0.0
    %1275 = vmatprep.subr.mxu0 0.0
    %1276 = vmatpush1.msra.mxu0 0.0
    %1277 = vmatprep.subr.mxu0 0.0
    %1278 = vmatpush1.msra.mxu0 0.0
    %1279 = vmatprep.mubr.f32.mxu0 0.0
    %1280 = vmatmul.mubr.f32.gmra.mrb[0].mxu0 %v1213
    %v1281 = vpop.f32.mrb[0].mxu0
    %v1282 = vadd.f32 0.0, %v1281
    %v1283 = vpop.f32.mrb[0].mxu0
    %1284 = vdwg.mxu0
    %1285 = vrot.lane.b32.xlu0 %v385, 64
    %v1286 = vpop.permute.xlu0 %1285
    %v1288 = vsel %vm397, %v1089, 0
    %1290 = vmatprep.subr.mxu0 0.0
    %1291 = vmatpush1.msra.mxu0 %v1286
    %1292 = vmatprep.subr.mxu0 0.0
    %1293 = vmatpush1.msra.mxu0 0.0
    %1294 = vmatprep.subr.mxu0 0.0
    %1295 = vmatpush1.msra.mxu0 0.0
    %1296 = vmatprep.subr.mxu0 0.0
    %1297 = vmatpush1.msra.mxu0 0.0
    %1298 = vmatprep.subr.mxu0 0.0
    %1299 = vmatpush1.msra.mxu0 0.0
    %1300 = vmatprep.subr.mxu0 0.0
    %1301 = vmatpush1.msra.mxu0 0.0
    %1302 = vmatprep.subr.mxu0 0.0
    %1303 = vmatpush1.msra.mxu0 0.0
    %1304 = vmatprep.subr.mxu0 0.0
    %1305 = vmatpush1.msra.mxu0 0.0
    %1306 = vmatprep.subr.mxu0 0.0
    %1307 = vmatpush1.msra.mxu0 0.0
    %1308 = vmatprep.subr.mxu0 0.0
    %1309 = vmatpush1.msra.mxu0 0.0
    %1310 = vmatprep.subr.mxu0 0.0
    %1311 = vmatpush1.msra.mxu0 0.0
    %1312 = vmatprep.subr.mxu0 0.0
    %1313 = vmatpush1.msra.mxu0 0.0
    %1314 = vmatprep.subr.mxu0 0.0
    %1315 = vmatpush1.msra.mxu0 0.0
    %1316 = vmatprep.subr.mxu0 0.0
    %1317 = vmatpush1.msra.mxu0 0.0
    %1318 = vmatprep.subr.mxu0 0.0
    %1319 = vmatpush1.msra.mxu0 0.0
    %1320 = vmatprep.subr.mxu0 0.0
    %1321 = vmatpush1.msra.mxu0 0.0
    %1322 = vmatprep.subr.mxu0 0.0
    %1323 = vmatpush1.msra.mxu0 0.0
    %1324 = vmatprep.subr.mxu0 0.0
    %1325 = vmatpush1.msra.mxu0 0.0
    %1326 = vmatprep.subr.mxu0 0.0
    %1327 = vmatpush1.msra.mxu0 0.0
    %1328 = vmatprep.subr.mxu0 0.0
    %1329 = vmatpush1.msra.mxu0 0.0
    %1330 = vmatprep.subr.mxu0 0.0
    %1331 = vmatpush1.msra.mxu0 0.0
    %1332 = vmatprep.subr.mxu0 0.0
    %1333 = vmatpush1.msra.mxu0 0.0
    %1334 = vmatprep.subr.mxu0 0.0
    %1335 = vmatpush1.msra.mxu0 0.0
    %1336 = vmatprep.subr.mxu0 0.0
    %1337 = vmatpush1.msra.mxu0 0.0
    %1338 = vmatprep.subr.mxu0 0.0
    %1339 = vmatpush1.msra.mxu0 0.0
    %1340 = vmatprep.subr.mxu0 0.0
    %1341 = vmatpush1.msra.mxu0 0.0
    %1342 = vmatprep.subr.mxu0 0.0
    %1343 = vmatpush1.msra.mxu0 0.0
    %1344 = vmatprep.subr.mxu0 0.0
    %1345 = vmatpush1.msra.mxu0 0.0
    %1346 = vmatprep.subr.mxu0 0.0
    %1347 = vmatpush1.msra.mxu0 0.0
    %1348 = vmatprep.subr.mxu0 0.0
    %1349 = vmatpush1.msra.mxu0 0.0
    %1350 = vmatprep.subr.mxu0 0.0
    %1351 = vmatpush1.msra.mxu0 0.0
    %1352 = vmatprep.subr.mxu0 0.0
    %1353 = vmatpush1.msra.mxu0 0.0
    %1354 = vmatprep.mubr.f32.mxu0 0.0
    %1355 = vmatmul.mubr.f32.gmra.mrb[0].mxu0 %v1288
    %v1356 = vpop.f32.mrb[0].mxu0
    %v1357 = vadd.f32 0.0, %v1356
    %v1358 = vpop.f32.mrb[0].mxu0
    %1359 = vdwg.mxu0
    %1360 = vrot.lane.b32.xlu0 %v387, 64
    %v1361 = vpop.permute.xlu0 %1360
    %v1363 = vsel %vm397, %v1091, 0
    %1365 = vmatprep.subr.mxu0 0.0
    %1366 = vmatpush1.msra.mxu0 %v1361
    %1367 = vmatprep.subr.mxu0 0.0
    %1368 = vmatpush1.msra.mxu0 0.0
    %1369 = vmatprep.subr.mxu0 0.0
    %1370 = vmatpush1.msra.mxu0 0.0
    %1371 = vmatprep.subr.mxu0 0.0
    %1372 = vmatpush1.msra.mxu0 0.0
    %1373 = vmatprep.subr.mxu0 0.0
    %1374 = vmatpush1.msra.mxu0 0.0
    %1375 = vmatprep.subr.mxu0 0.0
    %1376 = vmatpush1.msra.mxu0 0.0
    %1377 = vmatprep.subr.mxu0 0.0
    %1378 = vmatpush1.msra.mxu0 0.0
    %1379 = vmatprep.subr.mxu0 0.0
    %1380 = vmatpush1.msra.mxu0 0.0
    %1381 = vmatprep.subr.mxu0 0.0
    %1382 = vmatpush1.msra.mxu0 0.0
    %1383 = vmatprep.subr.mxu0 0.0
    %1384 = vmatpush1.msra.mxu0 0.0
    %1385 = vmatprep.subr.mxu0 0.0
    %1386 = vmatpush1.msra.mxu0 0.0
    %1387 = vmatprep.subr.mxu0 0.0
    %1388 = vmatpush1.msra.mxu0 0.0
    %1389 = vmatprep.subr.mxu0 0.0
    %1390 = vmatpush1.msra.mxu0 0.0
    %1391 = vmatprep.subr.mxu0 0.0
    %1392 = vmatpush1.msra.mxu0 0.0
    %1393 = vmatprep.subr.mxu0 0.0
    %1394 = vmatpush1.msra.mxu0 0.0
    %1395 = vmatprep.subr.mxu0 0.0
    %1396 = vmatpush1.msra.mxu0 0.0
    %1397 = vmatprep.subr.mxu0 0.0
    %1398 = vmatpush1.msra.mxu0 0.0
    %1399 = vmatprep.subr.mxu0 0.0
    %1400 = vmatpush1.msra.mxu0 0.0
    %1401 = vmatprep.subr.mxu0 0.0
    %1402 = vmatpush1.msra.mxu0 0.0
    %1403 = vmatprep.subr.mxu0 0.0
    %1404 = vmatpush1.msra.mxu0 0.0
    %1405 = vmatprep.subr.mxu0 0.0
    %1406 = vmatpush1.msra.mxu0 0.0
    %1407 = vmatprep.subr.mxu0 0.0
    %1408 = vmatpush1.msra.mxu0 0.0
    %1409 = vmatprep.subr.mxu0 0.0
    %1410 = vmatpush1.msra.mxu0 0.0
    %1411 = vmatprep.subr.mxu0 0.0
    %1412 = vmatpush1.msra.mxu0 0.0
    %1413 = vmatprep.subr.mxu0 0.0
    %1414 = vmatpush1.msra.mxu0 0.0
    %1415 = vmatprep.subr.mxu0 0.0
    %1416 = vmatpush1.msra.mxu0 0.0
    %1417 = vmatprep.subr.mxu0 0.0
    %1418 = vmatpush1.msra.mxu0 0.0
    %1419 = vmatprep.subr.mxu0 0.0
    %1420 = vmatpush1.msra.mxu0 0.0
    %1421 = vmatprep.subr.mxu0 0.0
    %1422 = vmatpush1.msra.mxu0 0.0
    %1423 = vmatprep.subr.mxu0 0.0
    %1424 = vmatpush1.msra.mxu0 0.0
    %1425 = vmatprep.subr.mxu0 0.0
    %1426 = vmatpush1.msra.mxu0 0.0
    %1427 = vmatprep.subr.mxu0 0.0
    %1428 = vmatpush1.msra.mxu0 0.0
    %1429 = vmatprep.mubr.f32.mxu0 0.0
    %1430 = vmatmul.mubr.f32.gmra.mrb[0].mxu0 %v1363
    %v1431 = vpop.f32.mrb[0].mxu0
    %v1432 = vadd.f32 0.0, %v1431
    %v1433 = vpop.f32.mrb[0].mxu0
    %1434 = vdwg.mxu0
    %1435 = vrot.lane.b32.xlu0 %v378, 64
    %v1436 = vpop.permute.xlu0 %1435
    %v1439 = vsel %vm397, %v1093, 0
    %1441 = vmatprep.subr.mxu0 0.0
    %1442 = vmatpush1.msra.mxu0 %v1436
    %1443 = vmatprep.subr.mxu0 0.0
    %1444 = vmatpush1.msra.mxu0 0.0
    %1445 = vmatprep.subr.mxu0 0.0
    %1446 = vmatpush1.msra.mxu0 0.0
    %1447 = vmatprep.subr.mxu0 0.0
    %1448 = vmatpush1.msra.mxu0 0.0
    %1449 = vmatprep.subr.mxu0 0.0
    %1450 = vmatpush1.msra.mxu0 0.0
    %1451 = vmatprep.subr.mxu0 0.0
    %1452 = vmatpush1.msra.mxu0 0.0
    %1453 = vmatprep.subr.mxu0 0.0
    %1454 = vmatpush1.msra.mxu0 0.0
    %1455 = vmatprep.subr.mxu0 0.0
    %1456 = vmatpush1.msra.mxu0 0.0
    %1457 = vmatprep.subr.mxu0 0.0
    %1458 = vmatpush1.msra.mxu0 0.0
    %1459 = vmatprep.subr.mxu0 0.0
    %1460 = vmatpush1.msra.mxu0 0.0
    %1461 = vmatprep.subr.mxu0 0.0
    %1462 = vmatpush1.msra.mxu0 0.0
    %1463 = vmatprep.subr.mxu0 0.0
    %1464 = vmatpush1.msra.mxu0 0.0
    %1465 = vmatprep.subr.mxu0 0.0
    %1466 = vmatpush1.msra.mxu0 0.0
    %1467 = vmatprep.subr.mxu0 0.0
    %1468 = vmatpush1.msra.mxu0 0.0
    %1469 = vmatprep.subr.mxu0 0.0
    %1470 = vmatpush1.msra.mxu0 0.0
    %1471 = vmatprep.subr.mxu0 0.0
    %1472 = vmatpush1.msra.mxu0 0.0
    %1473 = vmatprep.subr.mxu0 0.0
    %1474 = vmatpush1.msra.mxu0 0.0
    %1475 = vmatprep.subr.mxu0 0.0
    %1476 = vmatpush1.msra.mxu0 0.0
    %1477 = vmatprep.subr.mxu0 0.0
    %1478 = vmatpush1.msra.mxu0 0.0
    %1479 = vmatprep.subr.mxu0 0.0
    %1480 = vmatpush1.msra.mxu0 0.0
    %1481 = vmatprep.subr.mxu0 0.0
    %1482 = vmatpush1.msra.mxu0 0.0
    %1483 = vmatprep.subr.mxu0 0.0
    %1484 = vmatpush1.msra.mxu0 0.0
    %1485 = vmatprep.subr.mxu0 0.0
    %1486 = vmatpush1.msra.mxu0 0.0
    %1487 = vmatprep.subr.mxu0 0.0
    %1488 = vmatpush1.msra.mxu0 0.0
    %1489 = vmatprep.subr.mxu0 0.0
    %1490 = vmatpush1.msra.mxu0 0.0
    %1491 = vmatprep.subr.mxu0 0.0
    %1492 = vmatpush1.msra.mxu0 0.0
    %1493 = vmatprep.subr.mxu0 0.0
    %1494 = vmatpush1.msra.mxu0 0.0
    %1495 = vmatprep.subr.mxu0 0.0
    %1496 = vmatpush1.msra.mxu0 0.0
    %1497 = vmatprep.subr.mxu0 0.0
    %1498 = vmatpush1.msra.mxu0 0.0
    %1499 = vmatprep.subr.mxu0 0.0
    %1500 = vmatpush1.msra.mxu0 0.0
    %1501 = vmatprep.subr.mxu0 0.0
    %1502 = vmatpush1.msra.mxu0 0.0
    %1503 = vmatprep.subr.mxu0 0.0
    %1504 = vmatpush1.msra.mxu0 0.0
    %1505 = vmatprep.mubr.f32.mxu0 0.0
    %1506 = vmatmul.mubr.f32.gmra.mrb[0].mxu0 %v1439
    %v1507 = vpop.f32.mrb[0].mxu0
    %v1508 = vadd.f32 0.0, %v1507
    %v1509 = vpop.f32.mrb[0].mxu0
    %1510 = vdwg.mxu0
    %1511 = vrot.lane.b32.xlu0 %v390, 64
    %v1512 = vpop.permute.xlu0 %1511
    %v1514 = vsel %vm397, %v1095, 0
    %1516 = vmatprep.subr.mxu0 0.0
    %1517 = vmatpush1.msra.mxu0 %v1512
    %1518 = vmatprep.subr.mxu0 0.0
    %1519 = vmatpush1.msra.mxu0 0.0
    %1520 = vmatprep.subr.mxu0 0.0
    %1521 = vmatpush1.msra.mxu0 0.0
    %1522 = vmatprep.subr.mxu0 0.0
    %1523 = vmatpush1.msra.mxu0 0.0
    %1524 = vmatprep.subr.mxu0 0.0
    %1525 = vmatpush1.msra.mxu0 0.0
    %1526 = vmatprep.subr.mxu0 0.0
    %1527 = vmatpush1.msra.mxu0 0.0
    %1528 = vmatprep.subr.mxu0 0.0
    %1529 = vmatpush1.msra.mxu0 0.0
    %1530 = vmatprep.subr.mxu0 0.0
    %1531 = vmatpush1.msra.mxu0 0.0
    %1532 = vmatprep.subr.mxu0 0.0
    %1533 = vmatpush1.msra.mxu0 0.0
    %1534 = vmatprep.subr.mxu0 0.0
    %1535 = vmatpush1.msra.mxu0 0.0
    %1536 = vmatprep.subr.mxu0 0.0
    %1537 = vmatpush1.msra.mxu0 0.0
    %1538 = vmatprep.subr.mxu0 0.0
    %1539 = vmatpush1.msra.mxu0 0.0
    %1540 = vmatprep.subr.mxu0 0.0
    %1541 = vmatpush1.msra.mxu0 0.0
    %1542 = vmatprep.subr.mxu0 0.0
    %1543 = vmatpush1.msra.mxu0 0.0
    %1544 = vmatprep.subr.mxu0 0.0
    %1545 = vmatpush1.msra.mxu0 0.0
    %1546 = vmatprep.subr.mxu0 0.0
    %1547 = vmatpush1.msra.mxu0 0.0
    %1548 = vmatprep.subr.mxu0 0.0
    %1549 = vmatpush1.msra.mxu0 0.0
    %1550 = vmatprep.subr.mxu0 0.0
    %1551 = vmatpush1.msra.mxu0 0.0
    %1552 = vmatprep.subr.mxu0 0.0
    %1553 = vmatpush1.msra.mxu0 0.0
    %1554 = vmatprep.subr.mxu0 0.0
    %1555 = vmatpush1.msra.mxu0 0.0
    %1556 = vmatprep.subr.mxu0 0.0
    %1557 = vmatpush1.msra.mxu0 0.0
    %1558 = vmatprep.subr.mxu0 0.0
    %1559 = vmatpush1.msra.mxu0 0.0
    %1560 = vmatprep.subr.mxu0 0.0
    %1561 = vmatpush1.msra.mxu0 0.0
    %1562 = vmatprep.subr.mxu0 0.0
    %1563 = vmatpush1.msra.mxu0 0.0
    %1564 = vmatprep.subr.mxu0 0.0
    %1565 = vmatpush1.msra.mxu0 0.0
    %1566 = vmatprep.subr.mxu0 0.0
    %1567 = vmatpush1.msra.mxu0 0.0
    %1568 = vmatprep.subr.mxu0 0.0
    %1569 = vmatpush1.msra.mxu0 0.0
    %1570 = vmatprep.subr.mxu0 0.0
    %1571 = vmatpush1.msra.mxu0 0.0
    %1572 = vmatprep.subr.mxu0 0.0
    %1573 = vmatpush1.msra.mxu0 0.0
    %1574 = vmatprep.subr.mxu0 0.0
    %1575 = vmatpush1.msra.mxu0 0.0
    %1576 = vmatprep.subr.mxu0 0.0
    %1577 = vmatpush1.msra.mxu0 0.0
    %1578 = vmatprep.subr.mxu0 0.0
    %1579 = vmatpush1.msra.mxu0 0.0
    %1580 = vmatprep.mubr.f32.mxu0 0.0
    %1581 = vmatmul.mubr.f32.gmra.mrb[0].mxu0 %v1514
    %v1582 = vpop.f32.mrb[0].mxu0
    %v1583 = vadd.f32 0.0, %v1582
    %v1584 = vpop.f32.mrb[0].mxu0
    %1585 = vdwg.mxu0
    %1586 = vrot.lane.b32.xlu0 %v392, 64
    %v1587 = vpop.permute.xlu0 %1586
    %v1589 = vsel %vm397, %v1097, 0
    %1591 = vmatprep.subr.mxu0 0.0
    %1592 = vmatpush1.msra.mxu0 %v1587
    %1593 = vmatprep.subr.mxu0 0.0
    %1594 = vmatpush1.msra.mxu0 0.0
    %1595 = vmatprep.subr.mxu0 0.0
    %1596 = vmatpush1.msra.mxu0 0.0
    %1597 = vmatprep.subr.mxu0 0.0
    %1598 = vmatpush1.msra.mxu0 0.0
    %1599 = vmatprep.subr.mxu0 0.0
    %1600 = vmatpush1.msra.mxu0 0.0
    %1601 = vmatprep.subr.mxu0 0.0
    %1602 = vmatpush1.msra.mxu0 0.0
    %1603 = vmatprep.subr.mxu0 0.0
    %1604 = vmatpush1.msra.mxu0 0.0
    %1605 = vmatprep.subr.mxu0 0.0
    %1606 = vmatpush1.msra.mxu0 0.0
    %1607 = vmatprep.subr.mxu0 0.0
    %1608 = vmatpush1.msra.mxu0 0.0
    %1609 = vmatprep.subr.mxu0 0.0
    %1610 = vmatpush1.msra.mxu0 0.0
    %1611 = vmatprep.subr.mxu0 0.0
    %1612 = vmatpush1.msra.mxu0 0.0
    %1613 = vmatprep.subr.mxu0 0.0
    %1614 = vmatpush1.msra.mxu0 0.0
    %1615 = vmatprep.subr.mxu0 0.0
    %1616 = vmatpush1.msra.mxu0 0.0
    %1617 = vmatprep.subr.mxu0 0.0
    %1618 = vmatpush1.msra.mxu0 0.0
    %1619 = vmatprep.subr.mxu0 0.0
    %1620 = vmatpush1.msra.mxu0 0.0
    %1621 = vmatprep.subr.mxu0 0.0
    %1622 = vmatpush1.msra.mxu0 0.0
    %1623 = vmatprep.subr.mxu0 0.0
    %1624 = vmatpush1.msra.mxu0 0.0
    %1625 = vmatprep.subr.mxu0 0.0
    %1626 = vmatpush1.msra.mxu0 0.0
    %1627 = vmatprep.subr.mxu0 0.0
    %1628 = vmatpush1.msra.mxu0 0.0
    %1629 = vmatprep.subr.mxu0 0.0
    %1630 = vmatpush1.msra.mxu0 0.0
    %1631 = vmatprep.subr.mxu0 0.0
    %1632 = vmatpush1.msra.mxu0 0.0
    %1633 = vmatprep.subr.mxu0 0.0
    %1634 = vmatpush1.msra.mxu0 0.0
    %1635 = vmatprep.subr.mxu0 0.0
    %1636 = vmatpush1.msra.mxu0 0.0
    %1637 = vmatprep.subr.mxu0 0.0
    %1638 = vmatpush1.msra.mxu0 0.0
    %1639 = vmatprep.subr.mxu0 0.0
    %1640 = vmatpush1.msra.mxu0 0.0
    %1641 = vmatprep.subr.mxu0 0.0
    %1642 = vmatpush1.msra.mxu0 0.0
    %1643 = vmatprep.subr.mxu0 0.0
    %1644 = vmatpush1.msra.mxu0 0.0
    %1645 = vmatprep.subr.mxu0 0.0
    %1646 = vmatpush1.msra.mxu0 0.0
    %1647 = vmatprep.subr.mxu0 0.0
    %1648 = vmatpush1.msra.mxu0 0.0
    %1649 = vmatprep.subr.mxu0 0.0
    %1650 = vmatpush1.msra.mxu0 0.0
    %1651 = vmatprep.subr.mxu0 0.0
    %1652 = vmatpush1.msra.mxu0 0.0
    %1653 = vmatprep.subr.mxu0 0.0
    %1654 = vmatpush1.msra.mxu0 0.0
    %1655 = vmatprep.mubr.f32.mxu0 0.0
    %1656 = vmatmul.mubr.f32.gmra.mrb[0].mxu0 %v1589
    %v1657 = vpop.f32.mrb[0].mxu0
    %v1658 = vadd.f32 0.0, %v1657
    %v1659 = vpop.f32.mrb[0].mxu0
    %1660 = vdwg.mxu0
    %1661 = vrot.lane.b32.xlu0 %v394, 64
    %v1662 = vpop.permute.xlu0 %1661
    %v1664 = vsel %vm397, %v1099, 0
    %1666 = vmatprep.subr.mxu0 0.0
    %1667 = vmatpush1.msra.mxu0 %v1662
    %1668 = vmatprep.subr.mxu0 0.0
    %1669 = vmatpush1.msra.mxu0 0.0
    %1670 = vmatprep.subr.mxu0 0.0
    %1671 = vmatpush1.msra.mxu0 0.0
    %1672 = vmatprep.subr.mxu0 0.0
    %1673 = vmatpush1.msra.mxu0 0.0
    %1674 = vmatprep.subr.mxu0 0.0
    %1675 = vmatpush1.msra.mxu0 0.0
    %1676 = vmatprep.subr.mxu0 0.0
    %1677 = vmatpush1.msra.mxu0 0.0
    %1678 = vmatprep.subr.mxu0 0.0
    %1679 = vmatpush1.msra.mxu0 0.0
    %1680 = vmatprep.subr.mxu0 0.0
    %1681 = vmatpush1.msra.mxu0 0.0
    %1682 = vmatprep.subr.mxu0 0.0
    %1683 = vmatpush1.msra.mxu0 0.0
    %1684 = vmatprep.subr.mxu0 0.0
    %1685 = vmatpush1.msra.mxu0 0.0
    %1686 = vmatprep.subr.mxu0 0.0
    %1687 = vmatpush1.msra.mxu0 0.0
    %1688 = vmatprep.subr.mxu0 0.0
    %1689 = vmatpush1.msra.mxu0 0.0
    %1690 = vmatprep.subr.mxu0 0.0
    %1691 = vmatpush1.msra.mxu0 0.0
    %1692 = vmatprep.subr.mxu0 0.0
    %1693 = vmatpush1.msra.mxu0 0.0
    %1694 = vmatprep.subr.mxu0 0.0
    %1695 = vmatpush1.msra.mxu0 0.0
    %1696 = vmatprep.subr.mxu0 0.0
    %1697 = vmatpush1.msra.mxu0 0.0
    %1698 = vmatprep.subr.mxu0 0.0
    %1699 = vmatpush1.msra.mxu0 0.0
    %1700 = vmatprep.subr.mxu0 0.0
    %1701 = vmatpush1.msra.mxu0 0.0
    %1702 = vmatprep.subr.mxu0 0.0
    %1703 = vmatpush1.msra.mxu0 0.0
    %1704 = vmatprep.subr.mxu0 0.0
    %1705 = vmatpush1.msra.mxu0 0.0
    %1706 = vmatprep.subr.mxu0 0.0
    %1707 = vmatpush1.msra.mxu0 0.0
    %1708 = vmatprep.subr.mxu0 0.0
    %1709 = vmatpush1.msra.mxu0 0.0
    %1710 = vmatprep.subr.mxu0 0.0
    %1711 = vmatpush1.msra.mxu0 0.0
    %1712 = vmatprep.subr.mxu0 0.0
    %1713 = vmatpush1.msra.mxu0 0.0
    %1714 = vmatprep.subr.mxu0 0.0
    %1715 = vmatpush1.msra.mxu0 0.0
    %1716 = vmatprep.subr.mxu0 0.0
    %1717 = vmatpush1.msra.mxu0 0.0
    %1718 = vmatprep.subr.mxu0 0.0
    %1719 = vmatpush1.msra.mxu0 0.0
    %1720 = vmatprep.subr.mxu0 0.0
    %1721 = vmatpush1.msra.mxu0 0.0
    %1722 = vmatprep.subr.mxu0 0.0
    %1723 = vmatpush1.msra.mxu0 0.0
    %1724 = vmatprep.subr.mxu0 0.0
    %1725 = vmatpush1.msra.mxu0 0.0
    %1726 = vmatprep.subr.mxu0 0.0
    %1727 = vmatpush1.msra.mxu0 0.0
    %1728 = vmatprep.subr.mxu0 0.0
    %1729 = vmatpush1.msra.mxu0 0.0
    %1730 = vmatprep.mubr.f32.mxu0 0.0
    %1731 = vmatmul.mubr.f32.gmra.mrb[0].mxu0 %v1664
    %v1732 = vpop.f32.mrb[0].mxu0
    %v1733 = vadd.f32 0.0, %v1732
    %v1734 = vpop.f32.mrb[0].mxu0
    %1735 = vdwg.mxu0
    %1737 = vrot.lane.b32.xlu0 %v1282, 8
    %v1738 = vpop.permute.xlu0 %1737
    %1741 = vrot.lane.b32.xlu0 %v1357, 16
    %v1742 = vpop.permute.xlu0 %1741
    %1745 = vrot.lane.b32.xlu0 %v1432, 24
    %v1746 = vpop.permute.xlu0 %1745
    %v1748 = vsel %vm397, %v1207, %v1738
    %v1749 = vsel %vm1113, %v1748, %v1742
    %v1750 = vsel %vm1115, %v1749, %v1746
    %1752 = vrot.lane.b32.xlu0 %v1583, 8
    %v1753 = vpop.permute.xlu0 %1752
    %1756 = vrot.lane.b32.xlu0 %v1658, 16
    %v1757 = vpop.permute.xlu0 %1756
    %1760 = vrot.lane.b32.xlu0 %v1733, 24
    %v1761 = vpop.permute.xlu0 %1760
    %v1763 = vsel %vm397, %v1508, %v1753
    %v1764 = vsel %vm1113, %v1763, %v1757
    %v1765 = vsel %vm1115, %v1764, %v1761
    %v1766 = vld [vmem:[%s11] sm:$0xff]
    %v1767 = vld [vmem:[%s11 + $0x8] sm:$0xff]
    %v1768 = vld [vmem:[%s11 + $0x10] sm:$0xff]
    %v1769 = vld [vmem:[%s11 + $0x18] sm:$0xff]
    %v1770 = vld [vmem:[%s12] sm:$0x1]
    %v1772 = vlaneseq
    %v1773 = vshrl.u32 %v1772, 7
    %v1774 = vsub.s32 0, %v1773
    %v1775 = vrot.slane %v1770, %v1774
    %v1778 = vsel %vm158, %v1750, 0
    %v1781 = vsel %vm158, %v1765, 0
    %1783 = vmatprep.subr.mxu0 0.0
    %1784 = vmatpush1.msra.mxu0 %v1766
    %1785 = vmatprep.subr.mxu0 0.0
    %1786 = vmatpush1.msra.mxu0 %v1767
    %1787 = vmatprep.subr.mxu0 0.0
    %1788 = vmatpush1.msra.mxu0 %v1768
    %1789 = vmatprep.subr.mxu0 0.0
    %1790 = vmatpush1.msra.mxu0 %v1769
    %1791 = vmatprep.subr.mxu0 0.0
    %1792 = vmatpush1.msra.mxu0 0.0
    %1793 = vmatprep.subr.mxu0 0.0
    %1794 = vmatpush1.msra.mxu0 0.0
    %1795 = vmatprep.subr.mxu0 0.0
    %1796 = vmatpush1.msra.mxu0 0.0
    %1797 = vmatprep.subr.mxu0 0.0
    %1798 = vmatpush1.msra.mxu0 0.0
    %1799 = vmatprep.subr.mxu0 0.0
    %1800 = vmatpush1.msra.mxu0 0.0
    %1801 = vmatprep.subr.mxu0 0.0
    %1802 = vmatpush1.msra.mxu0 0.0
    %1803 = vmatprep.subr.mxu0 0.0
    %1804 = vmatpush1.msra.mxu0 0.0
    %1805 = vmatprep.subr.mxu0 0.0
    %1806 = vmatpush1.msra.mxu0 0.0
    %1807 = vmatprep.subr.mxu0 0.0
    %1808 = vmatpush1.msra.mxu0 0.0
    %1809 = vmatprep.subr.mxu0 0.0
    %1810 = vmatpush1.msra.mxu0 0.0
    %1811 = vmatprep.subr.mxu0 0.0
    %1812 = vmatpush1.msra.mxu0 0.0
    %1813 = vmatprep.subr.mxu0 0.0
    %1814 = vmatpush1.msra.mxu0 0.0
    %1815 = vmatprep.subr.mxu0 0.0
    %1816 = vmatpush1.msra.mxu0 0.0
    %1817 = vmatprep.subr.mxu0 0.0
    %1818 = vmatpush1.msra.mxu0 0.0
    %1819 = vmatprep.subr.mxu0 0.0
    %1820 = vmatpush1.msra.mxu0 0.0
    %1821 = vmatprep.subr.mxu0 0.0
    %1822 = vmatpush1.msra.mxu0 0.0
    %1823 = vmatprep.subr.mxu0 0.0
    %1824 = vmatpush1.msra.mxu0 0.0
    %1825 = vmatprep.subr.mxu0 0.0
    %1826 = vmatpush1.msra.mxu0 0.0
    %1827 = vmatprep.subr.mxu0 0.0
    %1828 = vmatpush1.msra.mxu0 0.0
    %1829 = vmatprep.subr.mxu0 0.0
    %1830 = vmatpush1.msra.mxu0 0.0
    %1831 = vmatprep.subr.mxu0 0.0
    %1832 = vmatpush1.msra.mxu0 0.0
    %1833 = vmatprep.subr.mxu0 0.0
    %1834 = vmatpush1.msra.mxu0 0.0
    %1835 = vmatprep.subr.mxu0 0.0
    %1836 = vmatpush1.msra.mxu0 0.0
    %1837 = vmatprep.subr.mxu0 0.0
    %1838 = vmatpush1.msra.mxu0 0.0
    %1839 = vmatprep.subr.mxu0 0.0
    %1840 = vmatpush1.msra.mxu0 0.0
    %1841 = vmatprep.subr.mxu0 0.0
    %1842 = vmatpush1.msra.mxu0 0.0
    %1843 = vmatprep.subr.mxu0 0.0
    %1844 = vmatpush1.msra.mxu0 0.0
    %1845 = vmatprep.subr.mxu0 0.0
    %1846 = vmatpush1.msra.mxu0 0.0
    %1847 = vmatprep.mubr.f32.mxu0 0.0
    %1848 = vmatmul.mubr.f32.gmra.mrb[0].mxu0 %v1778
    %v1849 = vpop.f32.mrb[0].mxu0
    %v1850 = vadd.f32 %v1775, %v1849
    %v1851 = vpop.f32.mrb[0].mxu0
    %1852 = vmatprep.mubr.f32.mxu0 0.0
    %1853 = vmatmul.mubr.f32.gmra.mrb[0].mxu0 %v1781
    %v1854 = vpop.f32.mrb[0].mxu0
    %v1855 = vadd.f32 %v1775, %v1854
    %v1856 = vpop.f32.mrb[0].mxu0
    %1857 = vdwg.mxu0
    %v1858 = vadd.f32 %v287, %v1850
    %v1859 = vadd.f32 %v288, %v1855
    %v1860 = vld [vmem:[%s13] sm:$0x1]
    %v1861 = vld [vmem:[%s14] sm:$0x1]
    %v1862 = vsel %vm158, %v1858, 0.0
    %1863 = vadd.xlane.f32.xlu0 %v1862
    %v1864 = vpop.xlane.xlu0 %1863
    %v1865 = vsel %vm158, %v1859, 0.0
    %1866 = vadd.xlane.f32.xlu0 %v1865
    %v1867 = vpop.xlane.xlu0 %1866
    %v1868 = vrcp.pop 32.0
    %v1869 = vmul.f32 %v1864, %v1868
    %v1870 = vmul.f32 %v1867, %v1868
    %v1871 = vsub.f32 %v1858, %v1869
    %v1872 = vsub.f32 %v1859, %v1870
    %v1873 = vmul.f32 %v1871, %v1871
    %v1874 = vmul.f32 %v1872, %v1872
    %v1875 = vsel %vm158, %v1873, 0.0
    %1876 = vadd.xlane.f32.xlu0 %v1875
    %v1877 = vpop.xlane.xlu0 %1876
    %v1878 = vsel %vm158, %v1874, 0.0
    %1879 = vadd.xlane.f32.xlu0 %v1878
    %v1880 = vpop.xlane.xlu0 %1879
    %v1881 = vmul.f32 %v1877, %v1868
    %v1882 = vmul.f32 %v1880, %v1868
    %v1883 = vadd.f32 %v1881, 1e-12
    %v1884 = vadd.f32 %v1882, 1e-12
    %v1885 = vrsqrt.pop %v1883
    %v1886 = vrsqrt.pop %v1884
    %v1887 = vmul.f32 %v1871, %v1885
    %v1888 = vmul.f32 %v1872, %v1886
    %v1890 = vlaneseq
    %v1891 = vshrl.u32 %v1890, 7
    %v1892 = vsub.s32 0, %v1891
    %v1893 = vrot.slane %v1860, %v1892
    %v1895 = vmul.f32 %v1887, %v1893
    %v1896 = vmul.f32 %v1888, %v1893
    %v1898 = vlaneseq
    %v1899 = vshrl.u32 %v1898, 7
    %v1900 = vsub.s32 0, %v1899
    %v1901 = vrot.slane %v1861, %v1900
    %v1903 = vadd.f32 %v1895, %v1901
    %v1904 = vadd.f32 %v1896, %v1901
    %v1905 = vld [vmem:[%s15] sm:$0xff]
    %v1906 = vld [vmem:[%s15 + $0x8] sm:$0xff]
    %v1907 = vld [vmem:[%s15 + $0x10] sm:$0xff]
    %v1908 = vld [vmem:[%s15 + $0x18] sm:$0xff]
    %v1909 = vld [vmem:[%s16] sm:$0x1]
    %v1911 = vlaneseq
    %v1912 = vshrl.u32 %v1911, 7
    %v1913 = vsub.s32 0, %v1912
    %v1914 = vrot.slane %v1909, %v1913
    %v1917 = vsel %vm158, %v1903, 0
    %v1920 = vsel %vm158, %v1904, 0
    %1922 = vmatprep.subr.mxu0 0.0
    %1923 = vmatpush1.msra.mxu0 %v1905
    %1924 = vmatprep.subr.mxu0 0.0
    %1925 = vmatpush1.msra.mxu0 %v1906
    %1926 = vmatprep.subr.mxu0 0.0
    %1927 = vmatpush1.msra.mxu0 %v1907
    %1928 = vmatprep.subr.mxu0 0.0
    %1929 = vmatpush1.msra.mxu0 %v1908
    %1930 = vmatprep.subr.mxu0 0.0
    %1931 = vmatpush1.msra.mxu0 0.0
    %1932 = vmatprep.subr.mxu0 0.0
    %1933 = vmatpush1.msra.mxu0 0.0
    %1934 = vmatprep.subr.mxu0 0.0
    %1935 = vmatpush1.msra.mxu0 0.0
    %1936 = vmatprep.subr.mxu0 0.0
    %1937 = vmatpush1.msra.mxu0 0.0
    %1938 = vmatprep.subr.mxu0 0.0
    %1939 = vmatpush1.msra.mxu0 0.0
    %1940 = vmatprep.subr.mxu0 0.0
    %1941 = vmatpush1.msra.mxu0 0.0
    %1942 = vmatprep.subr.mxu0 0.0
    %1943 = vmatpush1.msra.mxu0 0.0
    %1944 = vmatprep.subr.mxu0 0.0
    %1945 = vmatpush1.msra.mxu0 0.0
    %1946 = vmatprep.subr.mxu0 0.0
    %1947 = vmatpush1.msra.mxu0 0.0
    %1948 = vmatprep.subr.mxu0 0.0
    %1949 = vmatpush1.msra.mxu0 0.0
    %1950 = vmatprep.subr.mxu0 0.0
    %1951 = vmatpush1.msra.mxu0 0.0
    %1952 = vmatprep.subr.mxu0 0.0
    %1953 = vmatpush1.msra.mxu0 0.0
    %1954 = vmatprep.subr.mxu0 0.0
    %1955 = vmatpush1.msra.mxu0 0.0
    %1956 = vmatprep.subr.mxu0 0.0
    %1957 = vmatpush1.msra.mxu0 0.0
    %1958 = vmatprep.subr.mxu0 0.0
    %1959 = vmatpush1.msra.mxu0 0.0
    %1960 = vmatprep.subr.mxu0 0.0
    %1961 = vmatpush1.msra.mxu0 0.0
    %1962 = vmatprep.subr.mxu0 0.0
    %1963 = vmatpush1.msra.mxu0 0.0
    %1964 = vmatprep.subr.mxu0 0.0
    %1965 = vmatpush1.msra.mxu0 0.0
    %1966 = vmatprep.subr.mxu0 0.0
    %1967 = vmatpush1.msra.mxu0 0.0
    %1968 = vmatprep.subr.mxu0 0.0
    %1969 = vmatpush1.msra.mxu0 0.0
    %1970 = vmatprep.subr.mxu0 0.0
    %1971 = vmatpush1.msra.mxu0 0.0
    %1972 = vmatprep.subr.mxu0 0.0
    %1973 = vmatpush1.msra.mxu0 0.0
    %1974 = vmatprep.subr.mxu0 0.0
    %1975 = vmatpush1.msra.mxu0 0.0
    %1976 = vmatprep.subr.mxu0 0.0
    %1977 = vmatpush1.msra.mxu0 0.0
    %1978 = vmatprep.subr.mxu0 0.0
    %1979 = vmatpush1.msra.mxu0 0.0
    %1980 = vmatprep.subr.mxu0 0.0
    %1981 = vmatpush1.msra.mxu0 0.0
    %1982 = vmatprep.subr.mxu0 0.0
    %1983 = vmatpush1.msra.mxu0 0.0
    %1984 = vmatprep.subr.mxu0 0.0
    %1985 = vmatpush1.msra.mxu0 0.0
    %1986 = vmatprep.mubr.f32.mxu0 0.0
    %1987 = vmatmul.mubr.f32.gmra.mrb[0].mxu0 %v1917
    %v1988 = vpop.f32.mrb[0].mxu0
    %v1989 = vadd.f32 %v1914, %v1988
    %v1990 = vpop.f32.mrb[0].mxu0
    %1991 = vmatprep.mubr.f32.mxu0 0.0
    %1992 = vmatmul.mubr.f32.gmra.mrb[0].mxu0 %v1920
    %v1993 = vpop.f32.mrb[0].mxu0
    %v1994 = vadd.f32 %v1914, %v1993
    %v1995 = vpop.f32.mrb[0].mxu0
    %1996 = vdwg.mxu0
    %v1997 = vmul.f32 %v1989, %v1989
    %v1998 = vmul.f32 %v1994, %v1994
    %v1999 = vmul.f32 %v1989, %v1997
    %v2000 = vmul.f32 %v1994, %v1998
    %v2001 = vmul.f32 %v1999, 0.044715
    %v2002 = vmul.f32 %v2000, 0.044715
    %v2003 = vadd.f32 %v1989, %v2001
    %v2004 = vadd.f32 %v1994, %v2002
    %v2005 = vmul.f32 %v2003, 0.7978846
    %v2006 = vmul.f32 %v2004, 0.7978846
    %v2007 = vtanh.pop %v2005
    %v2008 = vtanh.pop %v2006
    %v2009 = vadd.f32 %v2007, 1.0
    %v2010 = vadd.f32 %v2008, 1.0
    %v2011 = vmul.f32 %v2009, 0.5
    %v2012 = vmul.f32 %v2010, 0.5
    %v2013 = vmul.f32 %v1989, %v2011
    %v2014 = vmul.f32 %v1994, %v2012
    %v2015 = vld [vmem:[%s17] sm:$0xff]
    %v2016 = vld [vmem:[%s17 + $0x8] sm:$0xff]
    %v2017 = vld [vmem:[%s17 + $0x10] sm:$0xff]
    %v2018 = vld [vmem:[%s17 + $0x18] sm:$0xff]
    %v2019 = vld [vmem:[%s17 + $0x20] sm:$0xff]
    %v2020 = vld [vmem:[%s17 + $0x28] sm:$0xff]
    %v2021 = vld [vmem:[%s17 + $0x30] sm:$0xff]
    %v2022 = vld [vmem:[%s17 + $0x38] sm:$0xff]
    %v2023 = vld [vmem:[%s18] sm:$0x1]
    %v2025 = vlaneseq
    %v2026 = vshrl.u32 %v2025, 7
    %v2027 = vsub.s32 0, %v2026
    %v2028 = vrot.slane %v2023, %v2027
    %vm2030 = vcmask 523264
    %v2032 = vsel %vm2030, %v2013, 0
    %v2035 = vsel %vm2030, %v2014, 0
    %2037 = vmatprep.subr.mxu0 0.0
    %2038 = vmatpush1.msra.mxu0 %v2015
    %2039 = vmatprep.subr.mxu0 0.0
    %2040 = vmatpush1.msra.mxu0 %v2016
    %2041 = vmatprep.subr.mxu0 0.0
    %2042 = vmatpush1.msra.mxu0 %v2017
    %2043 = vmatprep.subr.mxu0 0.0
    %2044 = vmatpush1.msra.mxu0 %v2018
    %2045 = vmatprep.subr.mxu0 0.0
    %2046 = vmatpush1.msra.mxu0 %v2019
    %2047 = vmatprep.subr.mxu0 0.0
    %2048 = vmatpush1.msra.mxu0 %v2020
    %2049 = vmatprep.subr.mxu0 0.0
    %2050 = vmatpush1.msra.mxu0 %v2021
    %2051 = vmatprep.subr.mxu0 0.0
    %2052 = vmatpush1.msra.mxu0 %v2022
    %2053 = vmatprep.subr.mxu0 0.0
    %2054 = vmatpush1.msra.mxu0 0.0
    %2055 = vmatprep.subr.mxu0 0.0
    %2056 = vmatpush1.msra.mxu0 0.0
    %2057 = vmatprep.subr.mxu0 0.0
    %2058 = vmatpush1.msra.mxu0 0.0
    %2059 = vmatprep.subr.mxu0 0.0
    %2060 = vmatpush1.msra.mxu0 0.0
    %2061 = vmatprep.subr.mxu0 0.0
    %2062 = vmatpush1.msra.mxu0 0.0
    %2063 = vmatprep.subr.mxu0 0.0
    %2064 = vmatpush1.msra.mxu0 0.0
    %2065 = vmatprep.subr.mxu0 0.0
    %2066 = vmatpush1.msra.mxu0 0.0
    %2067 = vmatprep.subr.mxu0 0.0
    %2068 = vmatpush1.msra.mxu0 0.0
    %2069 = vmatprep.subr.mxu0 0.0
    %2070 = vmatpush1.msra.mxu0 0.0
    %2071 = vmatprep.subr.mxu0 0.0
    %2072 = vmatpush1.msra.mxu0 0.0
    %2073 = vmatprep.subr.mxu0 0.0
    %2074 = vmatpush1.msra.mxu0 0.0
    %2075 = vmatprep.subr.mxu0 0.0
    %2076 = vmatpush1.msra.mxu0 0.0
    %2077 = vmatprep.subr.mxu0 0.0
    %2078 = vmatpush1.msra.mxu0 0.0
    %2079 = vmatprep.subr.mxu0 0.0
    %2080 = vmatpush1.msra.mxu0 0.0
    %2081 = vmatprep.subr.mxu0 0.0
    %2082 = vmatpush1.msra.mxu0 0.0
    %2083 = vmatprep.subr.mxu0 0.0
    %2084 = vmatpush1.msra.mxu0 0.0
    %2085 = vmatprep.subr.mxu0 0.0
    %2086 = vmatpush1.msra.mxu0 0.0
    %2087 = vmatprep.subr.mxu0 0.0
    %2088 = vmatpush1.msra.mxu0 0.0
    %2089 = vmatprep.subr.mxu0 0.0
    %2090 = vmatpush1.msra.mxu0 0.0
    %2091 = vmatprep.subr.mxu0 0.0
    %2092 = vmatpush1.msra.mxu0 0.0
    %2093 = vmatprep.subr.mxu0 0.0
    %2094 = vmatpush1.msra.mxu0 0.0
    %2095 = vmatprep.subr.mxu0 0.0
    %2096 = vmatpush1.msra.mxu0 0.0
    %2097 = vmatprep.subr.mxu0 0.0
    %2098 = vmatpush1.msra.mxu0 0.0
    %2099 = vmatprep.subr.mxu0 0.0
    %2100 = vmatpush1.msra.mxu0 0.0
    %2101 = vmatprep.mubr.f32.mxu0 0.0
    %2102 = vmatmul.mubr.f32.gmra.mrb[0].mxu0 %v2032
    %v2103 = vpop.f32.mrb[0].mxu0
    %v2104 = vadd.f32 %v2028, %v2103
    %v2105 = vpop.f32.mrb[0].mxu0
    %2106 = vmatprep.mubr.f32.mxu0 0.0
    %2107 = vmatmul.mubr.f32.gmra.mrb[0].mxu0 %v2035
    %v2108 = vpop.f32.mrb[0].mxu0
    %v2109 = vadd.f32 %v2028, %v2108
    %v2110 = vpop.f32.mrb[0].mxu0
    %2111 = vdwg.mxu0
    %v2112 = vadd.f32 %v1903, %v2104
    %v2113 = vadd.f32 %v1904, %v2109
    %v2114 = vld [vmem:[%s19] sm:$0x1]
    %v2115 = vld [vmem:[%s20] sm:$0x1]
    %v2116 = vsel %vm158, %v2112, 0.0
    %2117 = vadd.xlane.f32.xlu0 %v2116
    %v2118 = vpop.xlane.xlu0 %2117
    %v2119 = vsel %vm158, %v2113, 0.0
    %2120 = vadd.xlane.f32.xlu0 %v2119
    %v2121 = vpop.xlane.xlu0 %2120
    %v2122 = vmul.f32 %v2118, %v1868
    %v2123 = vmul.f32 %v2121, %v1868
    %v2124 = vsub.f32 %v2112, %v2122
    %v2125 = vsub.f32 %v2113, %v2123
    %v2126 = vmul.f32 %v2124, %v2124
    %v2127 = vmul.f32 %v2125, %v2125
    %v2128 = vsel %vm158, %v2126, 0.0
    %2129 = vadd.xlane.f32.xlu0 %v2128
    %v2130 = vpop.xlane.xlu0 %2129
    %v2131 = vsel %vm158, %v2127, 0.0
    %2132 = vadd.xlane.f32.xlu0 %v2131
    %v2133 = vpop.xlane.xlu0 %2132
    %v2134 = vmul.f32 %v2130, %v1868
    %v2135 = vmul.f32 %v2133, %v1868
    %v2136 = vadd.f32 %v2134, 1e-12
    %v2137 = vadd.f32 %v2135, 1e-12
    %v2138 = vrsqrt.pop %v2136
    %v2139 = vrsqrt.pop %v2137
    %v2140 = vmul.f32 %v2124, %v2138
    %v2141 = vmul.f32 %v2125, %v2139
    %v2143 = vlaneseq
    %v2144 = vshrl.u32 %v2143, 7
    %v2145 = vsub.s32 0, %v2144
    %v2146 = vrot.slane %v2114, %v2145
    %v2148 = vmul.f32 %v2140, %v2146
    %v2149 = vmul.f32 %v2141, %v2146
    %v2151 = vlaneseq
    %v2152 = vshrl.u32 %v2151, 7
    %v2153 = vsub.s32 0, %v2152
    %v2154 = vrot.slane %v2115, %v2153
    %v2156 = vadd.f32 %v2148, %v2154
    %v2157 = vadd.f32 %v2149, %v2154
    %2158 = vst.msk [vmem:[#allocation2] sm:$0xff] %vm158, %v2156
    %2159 = vst.msk [vmem:[#allocation2 + $0x8] sm:$0xff] %vm158, %v2157
    // Predicated region
    $region86: #{object_encoder_forward.1} parent=1 // pred_check
      _
    $region87: #{object_encoder_forward.1} parent=1 // pred_check_branch
      %2161 = sbr.rel (0) target = $region89
    $region88: #{object_encoder_forward.1} parent=1 // pred_region
      %s2163 = ssub.s32 256, 256
      %2164 = vsyncadd [#allocation3], %s2163
      %s2165 = sshll.u32 [#allocation2], 4
      %s2166 = int_to_ptr.vmem [resolvable:$true] %s2165
      %2171 = dma.vmem_to_hbm [thread:$0]  %s2166, 256, %s21, [#allocation3], 128, 128, 8
    $region89: #{object_encoder_forward.1} parent=1 // pred_fallthru
      _
    // Predicated region
    $region90: #{object_encoder_forward.1} parent=1 // pred_check
      _
    $region91: #{object_encoder_forward.1} parent=1 // pred_check_branch
      %2173 = sbr.rel (0) target = $region93
    $region92: #{object_encoder_forward.1} parent=1 // pred_region
      _
    $region93: #{object_encoder_forward.1} parent=1 // pred_fallthru
      _
    // Predicated region
    $region94: #{object_encoder_forward.1} parent=1 // pred_check
      _
    $region95: #{object_encoder_forward.1} parent=1 // pred_check_branch
      %2175 = sbr.rel (0) target = $region97
    $region96: #{object_encoder_forward.1} parent=1 // pred_region
      %2176 = dma.done [#allocation3], 256
    $region97: #{object_encoder_forward.1} parent=1 // pred_fallthru
      _
    // Predicated region
    $region98: #{object_encoder_forward.1} parent=1 // pred_check
      _
    $region99: #{object_encoder_forward.1} parent=1 // pred_check_branch
      %2178 = sbr.rel (0) target = $region101
    $region100: #{object_encoder_forward.1} parent=1 // pred_region
      _
    $region101: #{object_encoder_forward.1} parent=1 // pred_fallthru
      _
    %2179 = vsyncpa [#allocation3], 1

</llo_original>
